<compile_context>
chip_gen: v7x
topology: tpu7x:2x2x1
jax: 0.10.0
libtpu: 0.0.40
codegen_flags: <defaults>
</compile_context>

<pallas_src>
import jax
import jax.numpy as jnp
from jax.experimental import pallas as pl
from jax.experimental.pallas import tpu as pltpu


def shapes_receiver_kernel(msg_ref, embw_ref, wih_ref, whh_ref, bias_ref,
                           h_out_ref, emb_out_ref):
    TBS, V = msg_ref.shape            # batch-tile rows, flattened b-major
    E = embw_ref.shape[1]
    TB, H = h_out_ref.shape
    S = TBS // TB
    G = 4 * H

    # ---- Embedding hot path: one GEMM for the whole batch tile. ----
    emb = jnp.dot(msg_ref[...], embw_ref[...],
                  preferred_element_type=jnp.float32)            # [TB*S, E] f32
    emb_out_ref[...] = emb.astype(emb_out_ref.dtype)

    # ---- Hoisted input-side gate pre-activations (bias added once). ----
    x_gates = (jnp.dot(emb.astype(jnp.bfloat16), wih_ref[...],
                       preferred_element_type=jnp.float32)
               + bias_ref[...])                                  # [TB*S, 4H] f32
    x_gates = x_gates.reshape(TB, S, G)                          # [TB, S, 4H]

    whh = whh_ref[...]                                           # [H, 4H] bf16

    h = jnp.zeros((TB, H), jnp.float32)
    c = jnp.zeros((TB, H), jnp.float32)

    # ---- Serial LSTMCell recurrence: only h @ W_hh on the chain. ----
    # Message sequences in this module are short, so a static unroll gives
    # the LLO scheduler full visibility.
    # TODO(synk): for very long S, switch to lax.fori_loop + a VMEM scratch
    # holding x_gates to bound code size / live ranges.
    for t in range(S):
        gates = x_gates[:, t, :] + jnp.dot(
            h.astype(jnp.bfloat16), whh,
            preferred_element_type=jnp.float32)                  # [TB, 4H] f32
        # PyTorch LSTMCell gate order (i, f, g, o): sigmoid only on i|f and o,
        # tanh only on g -> half the transcendental work vs full-width both.
        i_f = jax.nn.sigmoid(gates[:, 0:2 * H])
        g_g = jnp.tanh(gates[:, 2 * H:3 * H])
        o_g = jax.nn.sigmoid(gates[:, 3 * H:4 * H])
        i_g = i_f[:, 0:H]
        f_g = i_f[:, H:2 * H]
        c = f_g * c + i_g * g_g
        h = o_g * jnp.tanh(c)

    h_out_ref[...] = h.astype(h_out_ref.dtype)


def shapes_receiver_forward(messages, embedding, w_ih, w_hh, b_ih, b_hh,
                            *, batch_block=None):
    """Training-mode forward of ShapesReceiver.

    messages:  [B, S, V] float32 soft message distributions.
    embedding: [V, E]; w_ih: [4H, E]; w_hh: [4H, H]; b_ih/b_hh: [4H].
    Returns (h_final [B, H] f32, emb [B, S, E] f32).
    """
    B, S, V = messages.shape
    E = embedding.shape[1]
    H = w_hh.shape[1]            # w_hh: [4H, H]
    G = 4 * H

    if batch_block is None:
        batch_block = B if B <= 8 else 8
    assert B % batch_block == 0, "batch must be divisible by batch_block"
    nb = B // batch_block

    # MXU operands in bf16 (f32 accumulation inside the kernel); the bias
    # stays f32 since it feeds the f32 gate math.  Weights pre-transposed so
    # the kernel does plain row-major matmuls.
    msg_flat = messages.reshape(B * S, V).astype(jnp.bfloat16)   # [B*S, V]
    embw = embedding.astype(jnp.bfloat16)                        # [V, E]
    wih_t = jnp.asarray(w_ih.T, jnp.bfloat16)                    # [E, 4H]
    whh_t = jnp.asarray(w_hh.T, jnp.bfloat16)                    # [H, 4H]
    bias = jnp.asarray(b_ih + b_hh, jnp.float32).reshape(1, G)

    out_shapes = (jax.ShapeDtypeStruct((B, H), jnp.float32),
                  jax.ShapeDtypeStruct((B * S, E), jnp.float32))

    grid_spec = pltpu.PrefetchScalarGridSpec(
        num_scalar_prefetch=0,
        grid=(nb,),
        in_specs=[
            pl.BlockSpec((batch_block * S, V), lambda i: (i, 0)),
            pl.BlockSpec((V, E), lambda i: (0, 0)),
            pl.BlockSpec((E, G), lambda i: (0, 0)),
            pl.BlockSpec((H, G), lambda i: (0, 0)),
            pl.BlockSpec((1, G), lambda i: (0, 0)),
        ],
        out_specs=[
            pl.BlockSpec((batch_block, H), lambda i: (i, 0)),
            pl.BlockSpec((batch_block * S, E), lambda i: (i, 0)),
        ],
    )

    h_out, emb_flat = pl.pallas_call(
        shapes_receiver_kernel,
        out_shape=out_shapes,
        grid_spec=grid_spec,
        compiler_params=pltpu.CompilerParams(
            dimension_semantics=("parallel",)),
    )(msg_flat, embw, wih_t, whh_t, bias)

    return h_out, emb_flat.reshape(B, S, E)


def _reference_forward(messages, embedding, w_ih, w_hh, b_ih, b_hh):
    """Pure-JAX f32 reference mirroring the PyTorch module (training mode)."""
    B, S, _ = messages.shape
    H = w_hh.shape[1]
    emb = jnp.einsum("bsv,ve->bse", messages, embedding)
    h = jnp.zeros((B, H), jnp.float32)
    c = jnp.zeros((B, H), jnp.float32)
    for t in range(S):
        gates = emb[:, t, :] @ w_ih.T + h @ w_hh.T + b_ih + b_hh
        i = jax.nn.sigmoid(gates[:, 0:H])
        f = jax.nn.sigmoid(gates[:, H:2 * H])
        g = jnp.tanh(gates[:, 2 * H:3 * H])
        o = jax.nn.sigmoid(gates[:, 3 * H:4 * H])
        c = f * c + i * g
        h = o * jnp.tanh(c)
    return h, emb


if __name__ == "__main__":
    # Small shapes consistent with the module's forward (lane-aligned so the
    # kernel stores are unmasked: E=128, 4H=256).
    vocab_size = 16
    embedding_size = 128
    hidden_size = 64
    batch = 2
    seq = 8

    key = jax.random.PRNGKey(0)
    k_emb, k_ih, k_hh, k_msg = jax.random.split(key, 4)

    # Deterministic parameter init mirroring reset_parameters():
    #   embedding ~ N(0, 0.1); W_ih xavier-uniform; W_hh orthogonal;
    #   b_ih = 0; b_hh = 0 except forget-gate slice [H:2H] = 1.
    embedding = 0.1 * jax.random.normal(
        k_emb, (vocab_size, embedding_size), jnp.float32)
    xavier_bound = (6.0 / (4 * hidden_size + embedding_size)) ** 0.5
    w_ih = jax.random.uniform(
        k_ih, (4 * hidden_size, embedding_size), jnp.float32,
        -xavier_bound, xavier_bound)
    w_hh = jax.nn.initializers.orthogonal()(
        k_hh, (4 * hidden_size, hidden_size), jnp.float32)
    b_ih = jnp.zeros((4 * hidden_size,), jnp.float32)
    b_hh = jnp.zeros((4 * hidden_size,), jnp.float32)
    b_hh = b_hh.at[hidden_size:2 * hidden_size].set(1.0)

    # Training-mode messages: soft distributions over the vocab.
    messages = jax.nn.softmax(
        jax.random.normal(k_msg, (batch, seq, vocab_size), jnp.float32),
        axis=-1)

    h_out, emb_out = shapes_receiver_forward(
        messages, embedding, w_ih, w_hh, b_ih, b_hh)
    jax.block_until_ready((h_out, emb_out))

    assert h_out.shape == (batch, hidden_size)
    assert emb_out.shape == (batch, seq, embedding_size)

    # Correctness vs pure-JAX f32 reference (kernel MXU operands are bf16,
    # so allow a generous but small tolerance).
    h_ref, emb_ref = _reference_forward(
        messages, embedding, w_ih, w_hh, b_ih, b_hh)
    h_err = float(jnp.max(jnp.abs(h_out - h_ref)))
    e_err = float(jnp.max(jnp.abs(emb_out - emb_ref)))
    assert h_err < 5e-2, f"h mismatch: {h_err}"
    assert e_err < 5e-2, f"emb mismatch: {e_err}"

    print("KERNEL_OK")
</pallas_src>

<mosaic_0001>
module attributes {stable_mosaic.version = 11 : i64} {
  func.func @shapes_receiver_kernel(%arg0: i32, %arg1: memref<16x16xbf16, #tpu.memory_space<vmem>>, %arg2: memref<16x128xbf16, #tpu.memory_space<vmem>>, %arg3: memref<128x256xbf16, #tpu.memory_space<vmem>>, %arg4: memref<64x256xbf16, #tpu.memory_space<vmem>>, %arg5: memref<1x256xf32, #tpu.memory_space<vmem>>, %arg6: memref<2x64xf32, #tpu.memory_space<vmem>>, %arg7: memref<16x128xf32, #tpu.memory_space<vmem>>) attributes {dimension_semantics = [#tpu.dimension_semantics<parallel>], iteration_bounds = array<i64: 1>, scalar_prefetch = 0 : i64, scratch_operands = 0 : i64, tpu.core_type = #tpu.core_type<tc>, window_params = [{transform_indices = @transform_0, window_bounds = array<i64: 16, 16>}, {pipeline_mode = #tpu.pipeline_mode<synchronous>, transform_indices = @transform_1, window_bounds = array<i64: 16, 128>}, {pipeline_mode = #tpu.pipeline_mode<synchronous>, transform_indices = @transform_2, window_bounds = array<i64: 128, 256>}, {pipeline_mode = #tpu.pipeline_mode<synchronous>, transform_indices = @transform_3, window_bounds = array<i64: 64, 256>}, {pipeline_mode = #tpu.pipeline_mode<synchronous>, transform_indices = @transform_4, window_bounds = array<i64: 1, 256>}, {transform_indices = @transform_5, window_bounds = array<i64: 2, 64>}, {transform_indices = @transform_6, window_bounds = array<i64: 16, 128>}]} {
    %c0 = arith.constant 0 : index
    %c0_0 = arith.constant 0 : index
    %0 = vector.load %arg1[%c0, %c0_0] : memref<16x16xbf16, #tpu.memory_space<vmem>>, vector<16x16xbf16>
    %c0_1 = arith.constant 0 : index
    %c0_2 = arith.constant 0 : index
    %1 = vector.load %arg2[%c0_1, %c0_2] : memref<16x128xbf16, #tpu.memory_space<vmem>>, vector<16x128xbf16>
    %cst = arith.constant dense<0.000000e+00> : vector<16x128xf32>
    %2 = tpu.matmul %0, %1, %cst {dimension_numbers = #tpu.dot_dimension_numbers<[1], [0], [0], [1], [0, 0, 1, 1], [], []>} : vector<16x16xbf16>, vector<16x128xbf16>, vector<16x128xf32> -> vector<16x128xf32>
    %c0_3 = arith.constant 0 : index
    %c0_4 = arith.constant 0 : index
    %3 = vector.load %arg7[%c0_3, %c0_4] : memref<16x128xf32, #tpu.memory_space<vmem>>, vector<16x128xf32>
    tpu.vector_store %arg7[%c0_3, %c0_4], %2 {strides = array<i32>} : memref<16x128xf32, #tpu.memory_space<vmem>>, vector<16x128xf32>,
    %4 = arith.truncf %2 : vector<16x128xf32> to vector<16x128xbf16>
    %c0_5 = arith.constant 0 : index
    %c0_6 = arith.constant 0 : index
    %5 = vector.load %arg3[%c0_5, %c0_6] : memref<128x256xbf16, #tpu.memory_space<vmem>>, vector<128x256xbf16>
    %cst_7 = arith.constant dense<0.000000e+00> : vector<16x256xf32>
    %6 = tpu.matmul %4, %5, %cst_7 {dimension_numbers = #tpu.dot_dimension_numbers<[1], [0], [0], [1], [0, 0, 1, 1], [], []>} : vector<16x128xbf16>, vector<128x256xbf16>, vector<16x256xf32> -> vector<16x256xf32>
    %c0_8 = arith.constant 0 : index
    %c0_9 = arith.constant 0 : index
    %7 = vector.load %arg5[%c0_8, %c0_9] : memref<1x256xf32, #tpu.memory_space<vmem>>, vector<1x256xf32>
    %8 = vector.broadcast %7 : vector<1x256xf32> to vector<16x256xf32>
    %9 = arith.addf %6, %8 : vector<16x256xf32>
    %10 = vector.shape_cast %9 : vector<16x256xf32> to vector<2x8x256xf32>
    %c0_10 = arith.constant 0 : index
    %c0_11 = arith.constant 0 : index
    %11 = vector.load %arg4[%c0_10, %c0_11] : memref<64x256xbf16, #tpu.memory_space<vmem>>, vector<64x256xbf16>
    %cst_12 = arith.constant 0.000000e+00 : f32
    %12 = vector.broadcast %cst_12 : f32 to vector<2x64xf32>
    %cst_13 = arith.constant 0.000000e+00 : f32
    %13 = vector.broadcast %cst_13 : f32 to vector<2x64xf32>
    %14 = vector.extract_strided_slice %10 {offsets = [0, 0, 0], sizes = [2, 1, 256], strides = [1, 1, 1]} : vector<2x8x256xf32> to vector<2x1x256xf32>
    %15 = vector.shape_cast %14 : vector<2x1x256xf32> to vector<2x256xf32>
    %16 = arith.truncf %12 : vector<2x64xf32> to vector<2x64xbf16>
    %cst_14 = arith.constant dense<0.000000e+00> : vector<2x256xf32>
    %17 = tpu.matmul %16, %11, %cst_14 {dimension_numbers = #tpu.dot_dimension_numbers<[1], [0], [0], [1], [0, 0, 1, 1], [], []>} : vector<2x64xbf16>, vector<64x256xbf16>, vector<2x256xf32> -> vector<2x256xf32>
    %18 = arith.addf %15, %17 : vector<2x256xf32>
    %19 = vector.extract_strided_slice %18 {offsets = [0, 0], sizes = [2, 128], strides = [1, 1]} : vector<2x256xf32> to vector<2x128xf32>
    %20 = arith.negf %19 : vector<2x128xf32>
    %21 = math.exp %20 : vector<2x128xf32>
    %cst_15 = arith.constant 1.000000e+00 : f32
    %22 = vector.broadcast %cst_15 : f32 to vector<2x128xf32>
    %23 = arith.addf %22, %21 : vector<2x128xf32>
    %24 = arith.divf %22, %23 : vector<2x128xf32>
    %25 = vector.extract_strided_slice %18 {offsets = [0, 128], sizes = [2, 64], strides = [1, 1]} : vector<2x256xf32> to vector<2x64xf32>
    %26 = math.tanh %25 : vector<2x64xf32>
    %27 = vector.extract_strided_slice %18 {offsets = [0, 192], sizes = [2, 64], strides = [1, 1]} : vector<2x256xf32> to vector<2x64xf32>
    %28 = arith.negf %27 : vector<2x64xf32>
    %29 = math.exp %28 : vector<2x64xf32>
    %cst_16 = arith.constant 1.000000e+00 : f32
    %30 = vector.broadcast %cst_16 : f32 to vector<2x64xf32>
    %31 = arith.addf %30, %29 : vector<2x64xf32>
    %32 = arith.divf %30, %31 : vector<2x64xf32>
    %33 = vector.extract_strided_slice %24 {offsets = [0, 0], sizes = [2, 64], strides = [1, 1]} : vector<2x128xf32> to vector<2x64xf32>
    %34 = vector.extract_strided_slice %24 {offsets = [0, 64], sizes = [2, 64], strides = [1, 1]} : vector<2x128xf32> to vector<2x64xf32>
    %35 = arith.mulf %34, %13 : vector<2x64xf32>
    %36 = arith.mulf %33, %26 : vector<2x64xf32>
    %37 = arith.addf %35, %36 : vector<2x64xf32>
    %38 = math.tanh %37 : vector<2x64xf32>
    %39 = arith.mulf %32, %38 : vector<2x64xf32>
    %40 = vector.extract_strided_slice %10 {offsets = [0, 1, 0], sizes = [2, 1, 256], strides = [1, 1, 1]} : vector<2x8x256xf32> to vector<2x1x256xf32>
    %41 = vector.shape_cast %40 : vector<2x1x256xf32> to vector<2x256xf32>
    %42 = arith.truncf %39 : vector<2x64xf32> to vector<2x64xbf16>
    %cst_17 = arith.constant dense<0.000000e+00> : vector<2x256xf32>
    %43 = tpu.matmul %42, %11, %cst_17 {dimension_numbers = #tpu.dot_dimension_numbers<[1], [0], [0], [1], [0, 0, 1, 1], [], []>} : vector<2x64xbf16>, vector<64x256xbf16>, vector<2x256xf32> -> vector<2x256xf32>
    %44 = arith.addf %41, %43 : vector<2x256xf32>
    %45 = vector.extract_strided_slice %44 {offsets = [0, 0], sizes = [2, 128], strides = [1, 1]} : vector<2x256xf32> to vector<2x128xf32>
    %46 = arith.negf %45 : vector<2x128xf32>
    %47 = math.exp %46 : vector<2x128xf32>
    %cst_18 = arith.constant 1.000000e+00 : f32
    %48 = vector.broadcast %cst_18 : f32 to vector<2x128xf32>
    %49 = arith.addf %48, %47 : vector<2x128xf32>
    %50 = arith.divf %48, %49 : vector<2x128xf32>
    %51 = vector.extract_strided_slice %44 {offsets = [0, 128], sizes = [2, 64], strides = [1, 1]} : vector<2x256xf32> to vector<2x64xf32>
    %52 = math.tanh %51 : vector<2x64xf32>
    %53 = vector.extract_strided_slice %44 {offsets = [0, 192], sizes = [2, 64], strides = [1, 1]} : vector<2x256xf32> to vector<2x64xf32>
    %54 = arith.negf %53 : vector<2x64xf32>
    %55 = math.exp %54 : vector<2x64xf32>
    %cst_19 = arith.constant 1.000000e+00 : f32
    %56 = vector.broadcast %cst_19 : f32 to vector<2x64xf32>
    %57 = arith.addf %56, %55 : vector<2x64xf32>
    %58 = arith.divf %56, %57 : vector<2x64xf32>
    %59 = vector.extract_strided_slice %50 {offsets = [0, 0], sizes = [2, 64], strides = [1, 1]} : vector<2x128xf32> to vector<2x64xf32>
    %60 = vector.extract_strided_slice %50 {offsets = [0, 64], sizes = [2, 64], strides = [1, 1]} : vector<2x128xf32> to vector<2x64xf32>
    %61 = arith.mulf %60, %37 : vector<2x64xf32>
    %62 = arith.mulf %59, %52 : vector<2x64xf32>
    %63 = arith.addf %61, %62 : vector<2x64xf32>
    %64 = math.tanh %63 : vector<2x64xf32>
    %65 = arith.mulf %58, %64 : vector<2x64xf32>
    %66 = vector.extract_strided_slice %10 {offsets = [0, 2, 0], sizes = [2, 1, 256], strides = [1, 1, 1]} : vector<2x8x256xf32> to vector<2x1x256xf32>
    %67 = vector.shape_cast %66 : vector<2x1x256xf32> to vector<2x256xf32>
    %68 = arith.truncf %65 : vector<2x64xf32> to vector<2x64xbf16>
    %cst_20 = arith.constant dense<0.000000e+00> : vector<2x256xf32>
    %69 = tpu.matmul %68, %11, %cst_20 {dimension_numbers = #tpu.dot_dimension_numbers<[1], [0], [0], [1], [0, 0, 1, 1], [], []>} : vector<2x64xbf16>, vector<64x256xbf16>, vector<2x256xf32> -> vector<2x256xf32>
    %70 = arith.addf %67, %69 : vector<2x256xf32>
    %71 = vector.extract_strided_slice %70 {offsets = [0, 0], sizes = [2, 128], strides = [1, 1]} : vector<2x256xf32> to vector<2x128xf32>
    %72 = arith.negf %71 : vector<2x128xf32>
    %73 = math.exp %72 : vector<2x128xf32>
    %cst_21 = arith.constant 1.000000e+00 : f32
    %74 = vector.broadcast %cst_21 : f32 to vector<2x128xf32>
    %75 = arith.addf %74, %73 : vector<2x128xf32>
    %76 = arith.divf %74, %75 : vector<2x128xf32>
    %77 = vector.extract_strided_slice %70 {offsets = [0, 128], sizes = [2, 64], strides = [1, 1]} : vector<2x256xf32> to vector<2x64xf32>
    %78 = math.tanh %77 : vector<2x64xf32>
    %79 = vector.extract_strided_slice %70 {offsets = [0, 192], sizes = [2, 64], strides = [1, 1]} : vector<2x256xf32> to vector<2x64xf32>
    %80 = arith.negf %79 : vector<2x64xf32>
    %81 = math.exp %80 : vector<2x64xf32>
    %cst_22 = arith.constant 1.000000e+00 : f32
    %82 = vector.broadcast %cst_22 : f32 to vector<2x64xf32>
    %83 = arith.addf %82, %81 : vector<2x64xf32>
    %84 = arith.divf %82, %83 : vector<2x64xf32>
    %85 = vector.extract_strided_slice %76 {offsets = [0, 0], sizes = [2, 64], strides = [1, 1]} : vector<2x128xf32> to vector<2x64xf32>
    %86 = vector.extract_strided_slice %76 {offsets = [0, 64], sizes = [2, 64], strides = [1, 1]} : vector<2x128xf32> to vector<2x64xf32>
    %87 = arith.mulf %86, %63 : vector<2x64xf32>
    %88 = arith.mulf %85, %78 : vector<2x64xf32>
    %89 = arith.addf %87, %88 : vector<2x64xf32>
    %90 = math.tanh %89 : vector<2x64xf32>
    %91 = arith.mulf %84, %90 : vector<2x64xf32>
    %92 = vector.extract_strided_slice %10 {offsets = [0, 3, 0], sizes = [2, 1, 256], strides = [1, 1, 1]} : vector<2x8x256xf32> to vector<2x1x256xf32>
    %93 = vector.shape_cast %92 : vector<2x1x256xf32> to vector<2x256xf32>
    %94 = arith.truncf %91 : vector<2x64xf32> to vector<2x64xbf16>
    %cst_23 = arith.constant dense<0.000000e+00> : vector<2x256xf32>
    %95 = tpu.matmul %94, %11, %cst_23 {dimension_numbers = #tpu.dot_dimension_numbers<[1], [0], [0], [1], [0, 0, 1, 1], [], []>} : vector<2x64xbf16>, vector<64x256xbf16>, vector<2x256xf32> -> vector<2x256xf32>
    %96 = arith.addf %93, %95 : vector<2x256xf32>
    %97 = vector.extract_strided_slice %96 {offsets = [0, 0], sizes = [2, 128], strides = [1, 1]} : vector<2x256xf32> to vector<2x128xf32>
    %98 = arith.negf %97 : vector<2x128xf32>
    %99 = math.exp %98 : vector<2x128xf32>
    %cst_24 = arith.constant 1.000000e+00 : f32
    %100 = vector.broadcast %cst_24 : f32 to vector<2x128xf32>
    %101 = arith.addf %100, %99 : vector<2x128xf32>
    %102 = arith.divf %100, %101 : vector<2x128xf32>
    %103 = vector.extract_strided_slice %96 {offsets = [0, 128], sizes = [2, 64], strides = [1, 1]} : vector<2x256xf32> to vector<2x64xf32>
    %104 = math.tanh %103 : vector<2x64xf32>
    %105 = vector.extract_strided_slice %96 {offsets = [0, 192], sizes = [2, 64], strides = [1, 1]} : vector<2x256xf32> to vector<2x64xf32>
    %106 = arith.negf %105 : vector<2x64xf32>
    %107 = math.exp %106 : vector<2x64xf32>
    %cst_25 = arith.constant 1.000000e+00 : f32
    %108 = vector.broadcast %cst_25 : f32 to vector<2x64xf32>
    %109 = arith.addf %108, %107 : vector<2x64xf32>
    %110 = arith.divf %108, %109 : vector<2x64xf32>
    %111 = vector.extract_strided_slice %102 {offsets = [0, 0], sizes = [2, 64], strides = [1, 1]} : vector<2x128xf32> to vector<2x64xf32>
    %112 = vector.extract_strided_slice %102 {offsets = [0, 64], sizes = [2, 64], strides = [1, 1]} : vector<2x128xf32> to vector<2x64xf32>
    %113 = arith.mulf %112, %89 : vector<2x64xf32>
    %114 = arith.mulf %111, %104 : vector<2x64xf32>
    %115 = arith.addf %113, %114 : vector<2x64xf32>
    %116 = math.tanh %115 : vector<2x64xf32>
    %117 = arith.mulf %110, %116 : vector<2x64xf32>
    %118 = vector.extract_strided_slice %10 {offsets = [0, 4, 0], sizes = [2, 1, 256], strides = [1, 1, 1]} : vector<2x8x256xf32> to vector<2x1x256xf32>
    %119 = vector.shape_cast %118 : vector<2x1x256xf32> to vector<2x256xf32>
    %120 = arith.truncf %117 : vector<2x64xf32> to vector<2x64xbf16>
    %cst_26 = arith.constant dense<0.000000e+00> : vector<2x256xf32>
    %121 = tpu.matmul %120, %11, %cst_26 {dimension_numbers = #tpu.dot_dimension_numbers<[1], [0], [0], [1], [0, 0, 1, 1], [], []>} : vector<2x64xbf16>, vector<64x256xbf16>, vector<2x256xf32> -> vector<2x256xf32>
    %122 = arith.addf %119, %121 : vector<2x256xf32>
    %123 = vector.extract_strided_slice %122 {offsets = [0, 0], sizes = [2, 128], strides = [1, 1]} : vector<2x256xf32> to vector<2x128xf32>
    %124 = arith.negf %123 : vector<2x128xf32>
    %125 = math.exp %124 : vector<2x128xf32>
    %cst_27 = arith.constant 1.000000e+00 : f32
    %126 = vector.broadcast %cst_27 : f32 to vector<2x128xf32>
    %127 = arith.addf %126, %125 : vector<2x128xf32>
    %128 = arith.divf %126, %127 : vector<2x128xf32>
    %129 = vector.extract_strided_slice %122 {offsets = [0, 128], sizes = [2, 64], strides = [1, 1]} : vector<2x256xf32> to vector<2x64xf32>
    %130 = math.tanh %129 : vector<2x64xf32>
    %131 = vector.extract_strided_slice %122 {offsets = [0, 192], sizes = [2, 64], strides = [1, 1]} : vector<2x256xf32> to vector<2x64xf32>
    %132 = arith.negf %131 : vector<2x64xf32>
    %133 = math.exp %132 : vector<2x64xf32>
    %cst_28 = arith.constant 1.000000e+00 : f32
    %134 = vector.broadcast %cst_28 : f32 to vector<2x64xf32>
    %135 = arith.addf %134, %133 : vector<2x64xf32>
    %136 = arith.divf %134, %135 : vector<2x64xf32>
    %137 = vector.extract_strided_slice %128 {offsets = [0, 0], sizes = [2, 64], strides = [1, 1]} : vector<2x128xf32> to vector<2x64xf32>
    %138 = vector.extract_strided_slice %128 {offsets = [0, 64], sizes = [2, 64], strides = [1, 1]} : vector<2x128xf32> to vector<2x64xf32>
    %139 = arith.mulf %138, %115 : vector<2x64xf32>
    %140 = arith.mulf %137, %130 : vector<2x64xf32>
    %141 = arith.addf %139, %140 : vector<2x64xf32>
    %142 = math.tanh %141 : vector<2x64xf32>
    %143 = arith.mulf %136, %142 : vector<2x64xf32>
    %144 = vector.extract_strided_slice %10 {offsets = [0, 5, 0], sizes = [2, 1, 256], strides = [1, 1, 1]} : vector<2x8x256xf32> to vector<2x1x256xf32>
    %145 = vector.shape_cast %144 : vector<2x1x256xf32> to vector<2x256xf32>
    %146 = arith.truncf %143 : vector<2x64xf32> to vector<2x64xbf16>
    %cst_29 = arith.constant dense<0.000000e+00> : vector<2x256xf32>
    %147 = tpu.matmul %146, %11, %cst_29 {dimension_numbers = #tpu.dot_dimension_numbers<[1], [0], [0], [1], [0, 0, 1, 1], [], []>} : vector<2x64xbf16>, vector<64x256xbf16>, vector<2x256xf32> -> vector<2x256xf32>
    %148 = arith.addf %145, %147 : vector<2x256xf32>
    %149 = vector.extract_strided_slice %148 {offsets = [0, 0], sizes = [2, 128], strides = [1, 1]} : vector<2x256xf32> to vector<2x128xf32>
    %150 = arith.negf %149 : vector<2x128xf32>
    %151 = math.exp %150 : vector<2x128xf32>
    %cst_30 = arith.constant 1.000000e+00 : f32
    %152 = vector.broadcast %cst_30 : f32 to vector<2x128xf32>
    %153 = arith.addf %152, %151 : vector<2x128xf32>
    %154 = arith.divf %152, %153 : vector<2x128xf32>
    %155 = vector.extract_strided_slice %148 {offsets = [0, 128], sizes = [2, 64], strides = [1, 1]} : vector<2x256xf32> to vector<2x64xf32>
    %156 = math.tanh %155 : vector<2x64xf32>
    %157 = vector.extract_strided_slice %148 {offsets = [0, 192], sizes = [2, 64], strides = [1, 1]} : vector<2x256xf32> to vector<2x64xf32>
    %158 = arith.negf %157 : vector<2x64xf32>
    %159 = math.exp %158 : vector<2x64xf32>
    %cst_31 = arith.constant 1.000000e+00 : f32
    %160 = vector.broadcast %cst_31 : f32 to vector<2x64xf32>
    %161 = arith.addf %160, %159 : vector<2x64xf32>
    %162 = arith.divf %160, %161 : vector<2x64xf32>
    %163 = vector.extract_strided_slice %154 {offsets = [0, 0], sizes = [2, 64], strides = [1, 1]} : vector<2x128xf32> to vector<2x64xf32>
    %164 = vector.extract_strided_slice %154 {offsets = [0, 64], sizes = [2, 64], strides = [1, 1]} : vector<2x128xf32> to vector<2x64xf32>
    %165 = arith.mulf %164, %141 : vector<2x64xf32>
    %166 = arith.mulf %163, %156 : vector<2x64xf32>
    %167 = arith.addf %165, %166 : vector<2x64xf32>
    %168 = math.tanh %167 : vector<2x64xf32>
    %169 = arith.mulf %162, %168 : vector<2x64xf32>
    %170 = vector.extract_strided_slice %10 {offsets = [0, 6, 0], sizes = [2, 1, 256], strides = [1, 1, 1]} : vector<2x8x256xf32> to vector<2x1x256xf32>
    %171 = vector.shape_cast %170 : vector<2x1x256xf32> to vector<2x256xf32>
    %172 = arith.truncf %169 : vector<2x64xf32> to vector<2x64xbf16>
    %cst_32 = arith.constant dense<0.000000e+00> : vector<2x256xf32>
    %173 = tpu.matmul %172, %11, %cst_32 {dimension_numbers = #tpu.dot_dimension_numbers<[1], [0], [0], [1], [0, 0, 1, 1], [], []>} : vector<2x64xbf16>, vector<64x256xbf16>, vector<2x256xf32> -> vector<2x256xf32>
    %174 = arith.addf %171, %173 : vector<2x256xf32>
    %175 = vector.extract_strided_slice %174 {offsets = [0, 0], sizes = [2, 128], strides = [1, 1]} : vector<2x256xf32> to vector<2x128xf32>
    %176 = arith.negf %175 : vector<2x128xf32>
    %177 = math.exp %176 : vector<2x128xf32>
    %cst_33 = arith.constant 1.000000e+00 : f32
    %178 = vector.broadcast %cst_33 : f32 to vector<2x128xf32>
    %179 = arith.addf %178, %177 : vector<2x128xf32>
    %180 = arith.divf %178, %179 : vector<2x128xf32>
    %181 = vector.extract_strided_slice %174 {offsets = [0, 128], sizes = [2, 64], strides = [1, 1]} : vector<2x256xf32> to vector<2x64xf32>
    %182 = math.tanh %181 : vector<2x64xf32>
    %183 = vector.extract_strided_slice %174 {offsets = [0, 192], sizes = [2, 64], strides = [1, 1]} : vector<2x256xf32> to vector<2x64xf32>
    %184 = arith.negf %183 : vector<2x64xf32>
    %185 = math.exp %184 : vector<2x64xf32>
    %cst_34 = arith.constant 1.000000e+00 : f32
    %186 = vector.broadcast %cst_34 : f32 to vector<2x64xf32>
    %187 = arith.addf %186, %185 : vector<2x64xf32>
    %188 = arith.divf %186, %187 : vector<2x64xf32>
    %189 = vector.extract_strided_slice %180 {offsets = [0, 0], sizes = [2, 64], strides = [1, 1]} : vector<2x128xf32> to vector<2x64xf32>
    %190 = vector.extract_strided_slice %180 {offsets = [0, 64], sizes = [2, 64], strides = [1, 1]} : vector<2x128xf32> to vector<2x64xf32>
    %191 = arith.mulf %190, %167 : vector<2x64xf32>
    %192 = arith.mulf %189, %182 : vector<2x64xf32>
    %193 = arith.addf %191, %192 : vector<2x64xf32>
    %194 = math.tanh %193 : vector<2x64xf32>
    %195 = arith.mulf %188, %194 : vector<2x64xf32>
    %196 = vector.extract_strided_slice %10 {offsets = [0, 7, 0], sizes = [2, 1, 256], strides = [1, 1, 1]} : vector<2x8x256xf32> to vector<2x1x256xf32>
    %197 = vector.shape_cast %196 : vector<2x1x256xf32> to vector<2x256xf32>
    %198 = arith.truncf %195 : vector<2x64xf32> to vector<2x64xbf16>
    %cst_35 = arith.constant dense<0.000000e+00> : vector<2x256xf32>
    %199 = tpu.matmul %198, %11, %cst_35 {dimension_numbers = #tpu.dot_dimension_numbers<[1], [0], [0], [1], [0, 0, 1, 1], [], []>} : vector<2x64xbf16>, vector<64x256xbf16>, vector<2x256xf32> -> vector<2x256xf32>
    %200 = arith.addf %197, %199 : vector<2x256xf32>
    %201 = vector.extract_strided_slice %200 {offsets = [0, 0], sizes = [2, 128], strides = [1, 1]} : vector<2x256xf32> to vector<2x128xf32>
    %202 = arith.negf %201 : vector<2x128xf32>
    %203 = math.exp %202 : vector<2x128xf32>
    %cst_36 = arith.constant 1.000000e+00 : f32
    %204 = vector.broadcast %cst_36 : f32 to vector<2x128xf32>
    %205 = arith.addf %204, %203 : vector<2x128xf32>
    %206 = arith.divf %204, %205 : vector<2x128xf32>
    %207 = vector.extract_strided_slice %200 {offsets = [0, 128], sizes = [2, 64], strides = [1, 1]} : vector<2x256xf32> to vector<2x64xf32>
    %208 = math.tanh %207 : vector<2x64xf32>
    %209 = vector.extract_strided_slice %200 {offsets = [0, 192], sizes = [2, 64], strides = [1, 1]} : vector<2x256xf32> to vector<2x64xf32>
    %210 = arith.negf %209 : vector<2x64xf32>
    %211 = math.exp %210 : vector<2x64xf32>
    %cst_37 = arith.constant 1.000000e+00 : f32
    %212 = vector.broadcast %cst_37 : f32 to vector<2x64xf32>
    %213 = arith.addf %212, %211 : vector<2x64xf32>
    %214 = arith.divf %212, %213 : vector<2x64xf32>
    %215 = vector.extract_strided_slice %206 {offsets = [0, 0], sizes = [2, 64], strides = [1, 1]} : vector<2x128xf32> to vector<2x64xf32>
    %216 = vector.extract_strided_slice %206 {offsets = [0, 64], sizes = [2, 64], strides = [1, 1]} : vector<2x128xf32> to vector<2x64xf32>
    %217 = arith.mulf %216, %193 : vector<2x64xf32>
    %218 = arith.mulf %215, %208 : vector<2x64xf32>
    %219 = arith.addf %217, %218 : vector<2x64xf32>
    %220 = math.tanh %219 : vector<2x64xf32>
    %221 = arith.mulf %214, %220 : vector<2x64xf32>
    %c0_38 = arith.constant 0 : index
    %c0_39 = arith.constant 0 : index
    %222 = vector.load %arg6[%c0_38, %c0_39] : memref<2x64xf32, #tpu.memory_space<vmem>>, vector<2x64xf32>
    tpu.vector_store %arg6[%c0_38, %c0_39], %221 {strides = array<i32>} : memref<2x64xf32, #tpu.memory_space<vmem>>, vector<2x64xf32>,
    return
  }
  func.func @transform_0(%arg0: i32) -> (i32, i32) {
    %c0_i32 = arith.constant 0 : i32
    %c0_i32_0 = arith.constant 0 : i32
    return %arg0, %c0_i32 : i32, i32
  }
  func.func @transform_1(%arg0: i32) -> (i32, i32) {
    %c0_i32 = arith.constant 0 : i32
    %c0_i32_0 = arith.constant 0 : i32
    %c0_i32_1 = arith.constant 0 : i32
    return %c0_i32, %c0_i32_0 : i32, i32
  }
  func.func @transform_2(%arg0: i32) -> (i32, i32) {
    %c0_i32 = arith.constant 0 : i32
    %c0_i32_0 = arith.constant 0 : i32
    %c0_i32_1 = arith.constant 0 : i32
    return %c0_i32, %c0_i32_0 : i32, i32
  }
  func.func @transform_3(%arg0: i32) -> (i32, i32) {
    %c0_i32 = arith.constant 0 : i32
    %c0_i32_0 = arith.constant 0 : i32
    %c0_i32_1 = arith.constant 0 : i32
    return %c0_i32, %c0_i32_0 : i32, i32
  }
  func.func @transform_4(%arg0: i32) -> (i32, i32) {
    %c0_i32 = arith.constant 0 : i32
    %c0_i32_0 = arith.constant 0 : i32
    %c0_i32_1 = arith.constant 0 : i32
    return %c0_i32, %c0_i32_0 : i32, i32
  }
  func.func @transform_5(%arg0: i32) -> (i32, i32) {
    %c0_i32 = arith.constant 0 : i32
    %c0_i32_0 = arith.constant 0 : i32
    return %arg0, %c0_i32 : i32, i32
  }
  func.func @transform_6(%arg0: i32) -> (i32, i32) {
    %c0_i32 = arith.constant 0 : i32
    %c0_i32_0 = arith.constant 0 : i32
    return %arg0, %c0_i32 : i32, i32
  }
}

</mosaic_0001>

<llo_original>
// kernel: tpu_custom_call.1
$region0: #{tpu_custom_call.1}
  #allocation0 [shape = 'u32[]', space=smem, size = 0x4, offset = 0x4, fixed_abs, tag = 'smem constant byte address 0x4 - core index']
  #allocation1 [shape = 'u32[144,128]{1,0:T(1,128)}', space=vmem, size = 0x12000, scoped, tag = 'internal scratch']
  %s0 = inlined_call_operand.hbm [shape: bf16[16,16], index: 0, kind: input, shape index: {}]
  %s1 = inlined_call_operand.hbm [shape: bf16[16,128], index: 1, kind: input, shape index: {}]
  %s2 = inlined_call_operand.hbm [shape: bf16[128,256], index: 2, kind: input, shape index: {}]
  %s3 = inlined_call_operand.hbm [shape: bf16[64,256], index: 3, kind: input, shape index: {}]
  %s4 = inlined_call_operand.vmem [shape: f32[1,256], index: 4, kind: input, shape index: {}]
  %s5 = inlined_call_operand.hbm [shape: f32[2,64], index: 5, kind: output, shape index: {0}]
  %s6 = inlined_call_operand.hbm [shape: f32[16,128], index: 6, kind: output, shape index: {1}]
  %7 = xla_tuple %s5, %s6
  %s8 = sld [smem:[#allocation0]]
  $region54: #{tpu_custom_call.1} parent=0
    _
  %s10 = ssub.s32 1, %s8
  %s11 = scalar_select 0, %s10, %s8
  $region1: #{tpu_custom_call.1} parent=0
    #allocation2 [shape = 'u8[4096]{0}', space=vmem, size = 0x1000, scoped, tag = 'input window, operand 0, single buffered']
    #allocation3 [shape = 's32[1]{0}', space=sflag, size = 0x4, scoped, tag = 'scoped memory for tpu_custom_call.1']
    #allocation4 [shape = 's32[1]{0}', space=sflag, size = 0x4, scoped, tag = 'scoped memory for tpu_custom_call.1']
    #allocation5 [shape = 'u8[4096]{0}', space=vmem, size = 0x1000, scoped, tag = 'input window, operand 1, single buffered']
    #allocation6 [shape = 's32[1]{0}', space=sflag, size = 0x4, scoped, tag = 'scoped memory for tpu_custom_call.1']
    #allocation7 [shape = 'u8[65536]{0}', space=vmem, size = 0x10000, scoped, tag = 'input window, operand 2, single buffered']
    #allocation8 [shape = 'u8[32768]{0}', space=vmem, size = 0x8000, scoped, tag = 'input window, operand 3, single buffered']
    #allocation9 [shape = 's32[1]{0}', space=sflag, size = 0x4, scoped, tag = 'scoped memory for tpu_custom_call.1']
    #allocation10 [shape = 'u8[1024]{0}', space=vmem, size = 0x400, scoped, tag = 'output window, operand 0, single buffered']
    #allocation11 [shape = 'u8[8192]{0}', space=vmem, size = 0x2000, scoped, tag = 'output window, operand 1, single buffered']
    #allocation12 [shape = 's32[1]{0}', space=sflag, size = 0x4, scoped, tag = 'scoped memory for tpu_custom_call.1']
    %12 = vsyncpa [#allocation3], 0
    %13 = vsyncpa [#allocation6], 0
    %14 = vsyncpa [#allocation9], 0
    %15 = vsyncpa [#allocation4], 0
    %16 = vsyncpa [#allocation12], 0
    // Predicated region
    $region2: #{tpu_custom_call.1} parent=1 // pred_check
      _
    $region3: #{tpu_custom_call.1} parent=1 // pred_check_branch
      %18 = sbr.rel (0) target = $region5
    $region4: #{tpu_custom_call.1} parent=1 // pred_region
      %s20 = ssub.s32 128, 128
      %21 = vsyncadd [#allocation3], %s20
      %s22 = sshll.u32 [#allocation2], 4
      %s23 = int_to_ptr.vmem [resolvable:$true] %s22
      %28 = dma.hbm_to_vmem [thread:$0]  %s0, 128, %s23, [#allocation3], 64, 64, 4
    $region5: #{tpu_custom_call.1} parent=1 // pred_fallthru
      _
    // Predicated region
    $region6: #{tpu_custom_call.1} parent=1 // pred_check
      _
    $region7: #{tpu_custom_call.1} parent=1 // pred_check_branch
      %30 = sbr.rel (0) target = $region9
    $region8: #{tpu_custom_call.1} parent=1 // pred_region
      %s32 = ssub.s32 128, 128
      %33 = vsyncadd [#allocation6], %s32
      %s34 = sshll.u32 [#allocation5], 4
      %s35 = int_to_ptr.vmem [resolvable:$true] %s34
      %40 = dma.hbm_to_vmem [thread:$0]  %s1, 128, %s35, [#allocation6], 64, 64, 4
    $region9: #{tpu_custom_call.1} parent=1 // pred_fallthru
      _
    // Predicated region
    $region10: #{tpu_custom_call.1} parent=1 // pred_check
      _
    $region11: #{tpu_custom_call.1} parent=1 // pred_check_branch
      %42 = sbr.rel (0) target = $region13
    $region12: #{tpu_custom_call.1} parent=1 // pred_region
      %s44 = ssub.s32 2048, 2048
      %45 = vsyncadd [#allocation6], %s44
      %s46 = sshll.u32 [#allocation7], 4
      %s47 = int_to_ptr.vmem [resolvable:$true] %s46
      %52 = dma.hbm_to_vmem [thread:$0]  %s2, 2048, %s47, [#allocation6], 128, 128, 8
    $region13: #{tpu_custom_call.1} parent=1 // pred_fallthru
      _
    // Predicated region
    $region14: #{tpu_custom_call.1} parent=1 // pred_check
      _
    $region15: #{tpu_custom_call.1} parent=1 // pred_check_branch
      %54 = sbr.rel (0) target = $region17
    $region16: #{tpu_custom_call.1} parent=1 // pred_region
      %s56 = ssub.s32 1024, 1024
      %57 = vsyncadd [#allocation9], %s56
      %s58 = sshll.u32 [#allocation8], 4
      %s59 = int_to_ptr.vmem [resolvable:$true] %s58
      %64 = dma.hbm_to_vmem [thread:$0]  %s3, 1024, %s59, [#allocation9], 128, 128, 8
    $region17: #{tpu_custom_call.1} parent=1 // pred_fallthru
      _
    // Predicated region
    $region18: #{tpu_custom_call.1} parent=1 // pred_check
      _
    $region19: #{tpu_custom_call.1} parent=1 // pred_check_branch
      %66 = sbr.rel (0) target = $region21
    $region20: #{tpu_custom_call.1} parent=1 // pred_region
      _
    $region21: #{tpu_custom_call.1} parent=1 // pred_fallthru
      _
    // Predicated region
    $region22: #{tpu_custom_call.1} parent=1 // pred_check
      _
    $region23: #{tpu_custom_call.1} parent=1 // pred_check_branch
      %68 = sbr.rel (0) target = $region25
    $region24: #{tpu_custom_call.1} parent=1 // pred_region
      %69 = dma.done [#allocation3], 128
    $region25: #{tpu_custom_call.1} parent=1 // pred_fallthru
      _
    // Predicated region
    $region26: #{tpu_custom_call.1} parent=1 // pred_check
      _
    $region27: #{tpu_custom_call.1} parent=1 // pred_check_branch
      %71 = sbr.rel (0) target = $region29
    $region28: #{tpu_custom_call.1} parent=1 // pred_region
      %72 = dma.done [#allocation6], 128
    $region29: #{tpu_custom_call.1} parent=1 // pred_fallthru
      _
    // Predicated region
    $region30: #{tpu_custom_call.1} parent=1 // pred_check
      _
    $region31: #{tpu_custom_call.1} parent=1 // pred_check_branch
      %74 = sbr.rel (0) target = $region33
    $region32: #{tpu_custom_call.1} parent=1 // pred_region
      %75 = dma.done [#allocation6], 2048
    $region33: #{tpu_custom_call.1} parent=1 // pred_fallthru
      _
    // Predicated region
    $region34: #{tpu_custom_call.1} parent=1 // pred_check
      _
    $region35: #{tpu_custom_call.1} parent=1 // pred_check_branch
      %77 = sbr.rel (0) target = $region37
    $region36: #{tpu_custom_call.1} parent=1 // pred_region
      %78 = dma.done [#allocation9], 1024
    $region37: #{tpu_custom_call.1} parent=1 // pred_fallthru
      _
    %v80 = vld [vmem:[#allocation2] sm:$0xf]
    %v81 = vld [vmem:[#allocation2 + $0x4] sm:$0xf]
    %v82 = vld [vmem:[#allocation5] sm:$0xf]
    %v83 = vld [vmem:[#allocation5 + $0x4] sm:$0xf]
    %v86 = vunpack.c.l.b16 %v80
    %v87 = vunpack.c.l.b16 %v81
    %v88 = vpack.c.b16 %v87, %v86
    %v91 = vunpack.c.l.b16 %v82
    %v92 = vunpack.c.l.b16 %v83
    %v93 = vpack.c.b16 %v92, %v91
    %vm95 = vcmask 130048
    %v97 = vsel %vm95, %v88, 0
    %99 = vmatprep.subr.bf16.mxu0 0
    %100 = vmatpush1.bf16.msra.mxu0 %v93
    %101 = vmatprep.subr.bf16.mxu0 0
    %102 = vmatpush1.bf16.msra.mxu0 0
    %103 = vmatprep.subr.bf16.mxu0 0
    %104 = vmatpush1.bf16.msra.mxu0 0
    %105 = vmatprep.subr.bf16.mxu0 0
    %106 = vmatpush1.bf16.msra.mxu0 0
    %107 = vmatprep.subr.bf16.mxu0 0
    %108 = vmatpush1.bf16.msra.mxu0 0
    %109 = vmatprep.subr.bf16.mxu0 0
    %110 = vmatpush1.bf16.msra.mxu0 0
    %111 = vmatprep.subr.bf16.mxu0 0
    %112 = vmatpush1.bf16.msra.mxu0 0
    %113 = vmatprep.subr.bf16.mxu0 0
    %114 = vmatpush1.bf16.msra.mxu0 0
    %115 = vmatprep.subr.bf16.mxu0 0
    %116 = vmatpush1.bf16.msra.mxu0 0
    %117 = vmatprep.subr.bf16.mxu0 0
    %118 = vmatpush1.bf16.msra.mxu0 0
    %119 = vmatprep.subr.bf16.mxu0 0
    %120 = vmatpush1.bf16.msra.mxu0 0
    %121 = vmatprep.subr.bf16.mxu0 0
    %122 = vmatpush1.bf16.msra.mxu0 0
    %123 = vmatprep.subr.bf16.mxu0 0
    %124 = vmatpush1.bf16.msra.mxu0 0
    %125 = vmatprep.subr.bf16.mxu0 0
    %126 = vmatpush1.bf16.msra.mxu0 0
    %127 = vmatprep.subr.bf16.mxu0 0
    %128 = vmatpush1.bf16.msra.mxu0 0
    %129 = vmatprep.subr.bf16.mxu0 0
    %130 = vmatpush1.bf16.msra.mxu0 0
    %131 = vmatprep.mubr.bf16.mxu0 0
    %132 = vmatmul.mubr.bf16.gmra.mrb[0].mxu0 %v97
    %v133 = vpop.f32.mrb[0].mxu0
    %v134 = vadd.f32 0.0, %v133
    %v135 = vpop.f32.mrb[0].mxu0
    %v136 = vpop.f32.mrb[0].mxu0
    %v137 = vadd.f32 0.0, %v136
    %v138 = vpop.f32.mrb[0].mxu0
    %139 = vdwg.mxu0
    %140 = vst [vmem:[#allocation11] sm:$0xff] %v134
    %141 = vst [vmem:[#allocation11 + $0x8] sm:$0xff] %v137
    %v142 = vpack.c.bf16 %v137, %v134
    %v143 = vld [vmem:[#allocation7] sm:$0xff]
    %v144 = vld [vmem:[#allocation7 + $0x8] sm:$0xff]
    %v145 = vld [vmem:[#allocation7 + $0x10] sm:$0xff]
    %v146 = vld [vmem:[#allocation7 + $0x18] sm:$0xff]
    %v147 = vld [vmem:[#allocation7 + $0x20] sm:$0xff]
    %v148 = vld [vmem:[#allocation7 + $0x28] sm:$0xff]
    %v149 = vld [vmem:[#allocation7 + $0x30] sm:$0xff]
    %v150 = vld [vmem:[#allocation7 + $0x38] sm:$0xff]
    %v151 = vld [vmem:[#allocation7 + $0x40] sm:$0xff]
    %v152 = vld [vmem:[#allocation7 + $0x48] sm:$0xff]
    %v153 = vld [vmem:[#allocation7 + $0x50] sm:$0xff]
    %v154 = vld [vmem:[#allocation7 + $0x58] sm:$0xff]
    %v155 = vld [vmem:[#allocation7 + $0x60] sm:$0xff]
    %v156 = vld [vmem:[#allocation7 + $0x68] sm:$0xff]
    %v157 = vld [vmem:[#allocation7 + $0x70] sm:$0xff]
    %v158 = vld [vmem:[#allocation7 + $0x78] sm:$0xff]
    %v159 = vld [vmem:[%s4] sm:$0x3]
    %v161 = vlaneseq
    %v162 = vshrl.u32 %v161, 7
    %v163 = vsub.s32 0, %v162
    %v164 = vrot.slane %v159, %v163
    %v165 = vlaneseq
    %v166 = vshrl.u32 %v165, 7
    %v167 = vsub.s32 1, %v166
    %v168 = vrot.slane %v159, %v167
    %v187 = vunpack.c.l.b16 %v143
    %v188 = vunpack.c.h.b16 %v143
    %v189 = vunpack.c.l.b16 %v144
    %v190 = vunpack.c.h.b16 %v144
    %v191 = vunpack.c.l.b16 %v145
    %v192 = vunpack.c.h.b16 %v145
    %v193 = vunpack.c.l.b16 %v146
    %v194 = vunpack.c.h.b16 %v146
    %v195 = vunpack.c.l.b16 %v147
    %v196 = vunpack.c.h.b16 %v147
    %v197 = vunpack.c.l.b16 %v148
    %v198 = vunpack.c.h.b16 %v148
    %v199 = vunpack.c.l.b16 %v149
    %v200 = vunpack.c.h.b16 %v149
    %v201 = vunpack.c.l.b16 %v150
    %v202 = vunpack.c.h.b16 %v150
    %v203 = vunpack.c.l.b16 %v151
    %v204 = vunpack.c.h.b16 %v151
    %v205 = vunpack.c.l.b16 %v152
    %v206 = vunpack.c.h.b16 %v152
    %v207 = vunpack.c.l.b16 %v153
    %v208 = vunpack.c.h.b16 %v153
    %v209 = vunpack.c.l.b16 %v154
    %v210 = vunpack.c.h.b16 %v154
    %v211 = vunpack.c.l.b16 %v155
    %v212 = vunpack.c.h.b16 %v155
    %v213 = vunpack.c.l.b16 %v156
    %v214 = vunpack.c.h.b16 %v156
    %v215 = vunpack.c.l.b16 %v157
    %v216 = vunpack.c.h.b16 %v157
    %v217 = vunpack.c.l.b16 %v158
    %v218 = vunpack.c.h.b16 %v158
    %v219 = vpack.c.b16 %v189, %v187
    %v220 = vpack.c.b16 %v190, %v188
    %v221 = vpack.c.b16 %v193, %v191
    %v222 = vpack.c.b16 %v194, %v192
    %v223 = vpack.c.b16 %v197, %v195
    %v224 = vpack.c.b16 %v198, %v196
    %v225 = vpack.c.b16 %v201, %v199
    %v226 = vpack.c.b16 %v202, %v200
    %v227 = vpack.c.b16 %v205, %v203
    %v228 = vpack.c.b16 %v206, %v204
    %v229 = vpack.c.b16 %v209, %v207
    %v230 = vpack.c.b16 %v210, %v208
    %v231 = vpack.c.b16 %v213, %v211
    %v232 = vpack.c.b16 %v214, %v212
    %v233 = vpack.c.b16 %v217, %v215
    %v234 = vpack.c.b16 %v218, %v216
    %251 = vmatprep.subr.bf16.mxu0 %v220
    %252 = vmatpush1.bf16.msra.mxu0 %v219
    %253 = vmatprep.subr.bf16.mxu0 %v222
    %254 = vmatpush1.bf16.msra.mxu0 %v221
    %255 = vmatprep.subr.bf16.mxu0 %v224
    %256 = vmatpush1.bf16.msra.mxu0 %v223
    %257 = vmatprep.subr.bf16.mxu0 %v226
    %258 = vmatpush1.bf16.msra.mxu0 %v225
    %259 = vmatprep.subr.bf16.mxu0 %v228
    %260 = vmatpush1.bf16.msra.mxu0 %v227
    %261 = vmatprep.subr.bf16.mxu0 %v230
    %262 = vmatpush1.bf16.msra.mxu0 %v229
    %263 = vmatprep.subr.bf16.mxu0 %v232
    %264 = vmatpush1.bf16.msra.mxu0 %v231
    %265 = vmatprep.subr.bf16.mxu0 %v234
    %266 = vmatpush1.bf16.msra.mxu0 %v233
    %267 = vmatprep.subr.bf16.mxu0 0
    %268 = vmatpush1.bf16.msra.mxu0 0
    %269 = vmatprep.subr.bf16.mxu0 0
    %270 = vmatpush1.bf16.msra.mxu0 0
    %271 = vmatprep.subr.bf16.mxu0 0
    %272 = vmatpush1.bf16.msra.mxu0 0
    %273 = vmatprep.subr.bf16.mxu0 0
    %274 = vmatpush1.bf16.msra.mxu0 0
    %275 = vmatprep.subr.bf16.mxu0 0
    %276 = vmatpush1.bf16.msra.mxu0 0
    %277 = vmatprep.subr.bf16.mxu0 0
    %278 = vmatpush1.bf16.msra.mxu0 0
    %279 = vmatprep.subr.bf16.mxu0 0
    %280 = vmatpush1.bf16.msra.mxu0 0
    %281 = vmatprep.subr.bf16.mxu0 0
    %282 = vmatpush1.bf16.msra.mxu0 0
    %283 = vmatprep.mubr.bf16.mxu0 0
    %284 = vmatmul.mubr.bf16.gmra.mrb[0].mxu0 %v142
    %v285 = vpop.f32.mrb[0].mxu0
    %v286 = vadd.f32 %v164, %v285
    %v287 = vpop.f32.mrb[0].mxu0
    %v288 = vadd.f32 %v168, %v287
    %v289 = vpop.f32.mrb[0].mxu0
    %v290 = vadd.f32 %v164, %v289
    %v291 = vpop.f32.mrb[0].mxu0
    %v292 = vadd.f32 %v168, %v291
    %293 = vdwg.mxu0
    %v294 = vld [vmem:[#allocation8] sm:$0xff]
    %v295 = vld [vmem:[#allocation8 + $0x8] sm:$0xff]
    %v296 = vld [vmem:[#allocation8 + $0x10] sm:$0xff]
    %v297 = vld [vmem:[#allocation8 + $0x18] sm:$0xff]
    %v298 = vld [vmem:[#allocation8 + $0x20] sm:$0xff]
    %v299 = vld [vmem:[#allocation8 + $0x28] sm:$0xff]
    %v300 = vld [vmem:[#allocation8 + $0x30] sm:$0xff]
    %v301 = vld [vmem:[#allocation8 + $0x38] sm:$0xff]
    %v310 = vunpack.c.l.b16 %v294
    %v311 = vunpack.c.h.b16 %v294
    %v312 = vunpack.c.l.b16 %v295
    %v313 = vunpack.c.h.b16 %v295
    %v314 = vunpack.c.l.b16 %v296
    %v315 = vunpack.c.h.b16 %v296
    %v316 = vunpack.c.l.b16 %v297
    %v317 = vunpack.c.h.b16 %v297
    %v318 = vunpack.c.l.b16 %v298
    %v319 = vunpack.c.h.b16 %v298
    %v320 = vunpack.c.l.b16 %v299
    %v321 = vunpack.c.h.b16 %v299
    %v322 = vunpack.c.l.b16 %v300
    %v323 = vunpack.c.h.b16 %v300
    %v324 = vunpack.c.l.b16 %v301
    %v325 = vunpack.c.h.b16 %v301
    %v326 = vpack.c.b16 %v312, %v310
    %v327 = vpack.c.b16 %v313, %v311
    %v328 = vpack.c.b16 %v316, %v314
    %v329 = vpack.c.b16 %v317, %v315
    %v330 = vpack.c.b16 %v320, %v318
    %v331 = vpack.c.b16 %v321, %v319
    %v332 = vpack.c.b16 %v324, %v322
    %v333 = vpack.c.b16 %v325, %v323
    %vm342 = vcmask 523264
    %v344 = vsel %vm342, 0, 0
    %346 = vmatprep.subr.bf16.mxu0 %v327
    %347 = vmatpush1.bf16.msra.mxu0 %v326
    %348 = vmatprep.subr.bf16.mxu0 %v329
    %349 = vmatpush1.bf16.msra.mxu0 %v328
    %350 = vmatprep.subr.bf16.mxu0 %v331
    %351 = vmatpush1.bf16.msra.mxu0 %v330
    %352 = vmatprep.subr.bf16.mxu0 %v333
    %353 = vmatpush1.bf16.msra.mxu0 %v332
    %354 = vmatprep.subr.bf16.mxu0 0
    %355 = vmatpush1.bf16.msra.mxu0 0
    %356 = vmatprep.subr.bf16.mxu0 0
    %357 = vmatpush1.bf16.msra.mxu0 0
    %358 = vmatprep.subr.bf16.mxu0 0
    %359 = vmatpush1.bf16.msra.mxu0 0
    %360 = vmatprep.subr.bf16.mxu0 0
    %361 = vmatpush1.bf16.msra.mxu0 0
    %362 = vmatprep.subr.bf16.mxu0 0
    %363 = vmatpush1.bf16.msra.mxu0 0
    %364 = vmatprep.subr.bf16.mxu0 0
    %365 = vmatpush1.bf16.msra.mxu0 0
    %366 = vmatprep.subr.bf16.mxu0 0
    %367 = vmatpush1.bf16.msra.mxu0 0
    %368 = vmatprep.subr.bf16.mxu0 0
    %369 = vmatpush1.bf16.msra.mxu0 0
    %370 = vmatprep.subr.bf16.mxu0 0
    %371 = vmatpush1.bf16.msra.mxu0 0
    %372 = vmatprep.subr.bf16.mxu0 0
    %373 = vmatpush1.bf16.msra.mxu0 0
    %374 = vmatprep.subr.bf16.mxu0 0
    %375 = vmatpush1.bf16.msra.mxu0 0
    %376 = vmatprep.subr.bf16.mxu0 0
    %377 = vmatpush1.bf16.msra.mxu0 0
    %378 = vmatprep.mubr.bf16.mxu0 0
    %379 = vmatmul.mubr.bf16.gmra.mrb[0].mxu0 %v344
    %v380 = vpop.f32.mrb[0].mxu0
    %v381 = vadd.f32 0.0, %v380
    %v382 = vpop.f32.mrb[0].mxu0
    %v383 = vadd.f32 0.0, %v382
    %v384 = vpop.f32.mrb[0].mxu0
    %v385 = vpop.f32.mrb[0].mxu0
    %386 = vdwg.mxu0
    %v389 = vrot.slane %v381, 1
    %v390 = vrot.slane %v383, 1
    %v395 = vadd.f32 %v286, %v381
    %v396 = vadd.f32 %v288, %v383
    %v397 = vadd.f32 %v290, %v389
    %v398 = vadd.f32 %v292, %v390
    %v399 = vxor.u32 %v395, 2147483648
    %v400 = vxor.u32 %v397, 2147483648
    %v401 = vmul.f32 %v399, 1.442695
    %v402 = vpow.pop %v401
    %v403 = vmul.f32 %v400, 1.442695
    %v404 = vpow.pop %v403
    %v405 = vadd.f32 %v402, 1.0
    %v406 = vadd.f32 %v404, 1.0
    %v407 = vrcp.pop %v405
    %v408 = vmul.f32 1.0, %v407
    %v409 = vrcp.pop %v406
    %v410 = vmul.f32 1.0, %v409
    %v411 = vtanh.pop %v396
    %v412 = vtanh.pop %v398
    %v413 = vxor.u32 %v396, 2147483648
    %v414 = vxor.u32 %v398, 2147483648
    %v415 = vmul.f32 %v413, 1.442695
    %v416 = vpow.pop %v415
    %v417 = vmul.f32 %v414, 1.442695
    %v418 = vpow.pop %v417
    %v419 = vadd.f32 %v416, 1.0
    %v420 = vadd.f32 %v418, 1.0
    %v421 = vrcp.pop %v419
    %v422 = vmul.f32 1.0, %v421
    %v423 = vrcp.pop %v420
    %v424 = vmul.f32 1.0, %v423
    %v425 = vmul.f32 %v408, 0.0
    %v426 = vmul.f32 %v410, 0.0
    %v427 = vmul.f32 %v408, %v411
    %v428 = vmul.f32 %v410, %v412
    %431 = vrot.lane.b32.xlu0 %v427, 64
    %v432 = vpop.permute.xlu0 %431
    %433 = vrot.lane.b32.xlu0 %v428, 64
    %v434 = vpop.permute.xlu0 %433
    %v437 = vadd.f32 %v425, %v432
    %v438 = vadd.f32 %v426, %v434
    %v439 = vtanh.pop %v437
    %v440 = vtanh.pop %v438
    %v441 = vmul.f32 %v422, %v439
    %v442 = vmul.f32 %v424, %v440
    %v443 = vpack.c.bf16 %v441, %v441
    %v444 = vpack.c.bf16 %v442, %v442
    %v447 = vunpack.c.l.b16 %v443
    %v448 = vunpack.c.l.b16 %v444
    %v449 = vrot.slane %v448, 7
    %vm450 = vcmask 1041409
    %v451 = vsel %vm450, %v449, %v447
    %v452 = vpack.c.b16 %v451, %v451
    %453 = vrot.lane.b32.xlu0 %v452, 64
    %v454 = vpop.permute.xlu0 %453
    %v456 = vsel %vm342, %v454, 0
    %458 = vmatprep.subr.bf16.mxu0 %v327
    %459 = vmatpush1.bf16.msra.mxu0 %v326
    %460 = vmatprep.subr.bf16.mxu0 %v329
    %461 = vmatpush1.bf16.msra.mxu0 %v328
    %462 = vmatprep.subr.bf16.mxu0 %v331
    %463 = vmatpush1.bf16.msra.mxu0 %v330
    %464 = vmatprep.subr.bf16.mxu0 %v333
    %465 = vmatpush1.bf16.msra.mxu0 %v332
    %466 = vmatprep.subr.bf16.mxu0 0
    %467 = vmatpush1.bf16.msra.mxu0 0
    %468 = vmatprep.subr.bf16.mxu0 0
    %469 = vmatpush1.bf16.msra.mxu0 0
    %470 = vmatprep.subr.bf16.mxu0 0
    %471 = vmatpush1.bf16.msra.mxu0 0
    %472 = vmatprep.subr.bf16.mxu0 0
    %473 = vmatpush1.bf16.msra.mxu0 0
    %474 = vmatprep.subr.bf16.mxu0 0
    %475 = vmatpush1.bf16.msra.mxu0 0
    %476 = vmatprep.subr.bf16.mxu0 0
    %477 = vmatpush1.bf16.msra.mxu0 0
    %478 = vmatprep.subr.bf16.mxu0 0
    %479 = vmatpush1.bf16.msra.mxu0 0
    %480 = vmatprep.subr.bf16.mxu0 0
    %481 = vmatpush1.bf16.msra.mxu0 0
    %482 = vmatprep.subr.bf16.mxu0 0
    %483 = vmatpush1.bf16.msra.mxu0 0
    %484 = vmatprep.subr.bf16.mxu0 0
    %485 = vmatpush1.bf16.msra.mxu0 0
    %486 = vmatprep.subr.bf16.mxu0 0
    %487 = vmatpush1.bf16.msra.mxu0 0
    %488 = vmatprep.subr.bf16.mxu0 0
    %489 = vmatpush1.bf16.msra.mxu0 0
    %490 = vmatprep.mubr.bf16.mxu0 0
    %491 = vmatmul.mubr.bf16.gmra.mrb[0].mxu0 %v456
    %v492 = vpop.f32.mrb[0].mxu0
    %v493 = vadd.f32 0.0, %v492
    %v494 = vpop.f32.mrb[0].mxu0
    %v495 = vadd.f32 0.0, %v494
    %v496 = vpop.f32.mrb[0].mxu0
    %v497 = vpop.f32.mrb[0].mxu0
    %498 = vdwg.mxu0
    %v501 = vrot.slane %v493, 7
    %v502 = vrot.slane %v495, 7
    %v507 = vadd.f32 %v286, %v501
    %v508 = vadd.f32 %v288, %v502
    %v509 = vadd.f32 %v290, %v493
    %v510 = vadd.f32 %v292, %v495
    %v511 = vxor.u32 %v507, 2147483648
    %v512 = vxor.u32 %v509, 2147483648
    %v513 = vmul.f32 %v511, 1.442695
    %v514 = vpow.pop %v513
    %v515 = vmul.f32 %v512, 1.442695
    %v516 = vpow.pop %v515
    %v517 = vadd.f32 %v514, 1.0
    %v518 = vadd.f32 %v516, 1.0
    %v519 = vrcp.pop %v517
    %v520 = vmul.f32 1.0, %v519
    %v521 = vrcp.pop %v518
    %v522 = vmul.f32 1.0, %v521
    %v523 = vtanh.pop %v508
    %v524 = vtanh.pop %v510
    %v525 = vxor.u32 %v508, 2147483648
    %v526 = vxor.u32 %v510, 2147483648
    %v527 = vmul.f32 %v525, 1.442695
    %v528 = vpow.pop %v527
    %v529 = vmul.f32 %v526, 1.442695
    %v530 = vpow.pop %v529
    %v531 = vadd.f32 %v528, 1.0
    %v532 = vadd.f32 %v530, 1.0
    %v533 = vrcp.pop %v531
    %v534 = vmul.f32 1.0, %v533
    %v535 = vrcp.pop %v532
    %v536 = vmul.f32 1.0, %v535
    %v539 = vrot.slane %v437, 7
    %v540 = vrot.slane %v438, 7
    %v543 = vmul.f32 %v520, %v539
    %v544 = vmul.f32 %v522, %v540
    %v545 = vmul.f32 %v520, %v523
    %v546 = vmul.f32 %v522, %v524
    %549 = vrot.lane.b32.xlu0 %v545, 64
    %v550 = vpop.permute.xlu0 %549
    %551 = vrot.lane.b32.xlu0 %v546, 64
    %v552 = vpop.permute.xlu0 %551
    %v555 = vadd.f32 %v543, %v550
    %v556 = vadd.f32 %v544, %v552
    %v557 = vtanh.pop %v555
    %v558 = vtanh.pop %v556
    %v559 = vmul.f32 %v534, %v557
    %v560 = vmul.f32 %v536, %v558
    %v561 = vpack.c.bf16 %v559, %v559
    %v562 = vpack.c.bf16 %v560, %v560
    %v565 = vunpack.c.l.b16 %v561
    %v566 = vunpack.c.l.b16 %v562
    %v567 = vrot.slane %v565, 1
    %v568 = vsel %vm450, %v566, %v567
    %v569 = vpack.c.b16 %v568, %v568
    %570 = vrot.lane.b32.xlu0 %v569, 64
    %v571 = vpop.permute.xlu0 %570
    %v573 = vsel %vm342, %v571, 0
    %575 = vmatprep.subr.bf16.mxu0 %v327
    %576 = vmatpush1.bf16.msra.mxu0 %v326
    %577 = vmatprep.subr.bf16.mxu0 %v329
    %578 = vmatpush1.bf16.msra.mxu0 %v328
    %579 = vmatprep.subr.bf16.mxu0 %v331
    %580 = vmatpush1.bf16.msra.mxu0 %v330
    %581 = vmatprep.subr.bf16.mxu0 %v333
    %582 = vmatpush1.bf16.msra.mxu0 %v332
    %583 = vmatprep.subr.bf16.mxu0 0
    %584 = vmatpush1.bf16.msra.mxu0 0
    %585 = vmatprep.subr.bf16.mxu0 0
    %586 = vmatpush1.bf16.msra.mxu0 0
    %587 = vmatprep.subr.bf16.mxu0 0
    %588 = vmatpush1.bf16.msra.mxu0 0
    %589 = vmatprep.subr.bf16.mxu0 0
    %590 = vmatpush1.bf16.msra.mxu0 0
    %591 = vmatprep.subr.bf16.mxu0 0
    %592 = vmatpush1.bf16.msra.mxu0 0
    %593 = vmatprep.subr.bf16.mxu0 0
    %594 = vmatpush1.bf16.msra.mxu0 0
    %595 = vmatprep.subr.bf16.mxu0 0
    %596 = vmatpush1.bf16.msra.mxu0 0
    %597 = vmatprep.subr.bf16.mxu0 0
    %598 = vmatpush1.bf16.msra.mxu0 0
    %599 = vmatprep.subr.bf16.mxu0 0
    %600 = vmatpush1.bf16.msra.mxu0 0
    %601 = vmatprep.subr.bf16.mxu0 0
    %602 = vmatpush1.bf16.msra.mxu0 0
    %603 = vmatprep.subr.bf16.mxu0 0
    %604 = vmatpush1.bf16.msra.mxu0 0
    %605 = vmatprep.subr.bf16.mxu0 0
    %606 = vmatpush1.bf16.msra.mxu0 0
    %607 = vmatprep.mubr.bf16.mxu0 0
    %608 = vmatmul.mubr.bf16.gmra.mrb[0].mxu0 %v573
    %v609 = vpop.f32.mrb[0].mxu0
    %v610 = vadd.f32 0.0, %v609
    %v611 = vpop.f32.mrb[0].mxu0
    %v612 = vadd.f32 0.0, %v611
    %v613 = vpop.f32.mrb[0].mxu0
    %v614 = vpop.f32.mrb[0].mxu0
    %615 = vdwg.mxu0
    %v618 = vrot.slane %v610, 6
    %v619 = vrot.slane %v612, 6
    %v620 = vrot.slane %v610, 7
    %v621 = vrot.slane %v612, 7
    %v626 = vadd.f32 %v286, %v618
    %v627 = vadd.f32 %v288, %v619
    %v628 = vadd.f32 %v290, %v620
    %v629 = vadd.f32 %v292, %v621
    %v630 = vxor.u32 %v626, 2147483648
    %v631 = vxor.u32 %v628, 2147483648
    %v632 = vmul.f32 %v630, 1.442695
    %v633 = vpow.pop %v632
    %v634 = vmul.f32 %v631, 1.442695
    %v635 = vpow.pop %v634
    %v636 = vadd.f32 %v633, 1.0
    %v637 = vadd.f32 %v635, 1.0
    %v638 = vrcp.pop %v636
    %v639 = vmul.f32 1.0, %v638
    %v640 = vrcp.pop %v637
    %v641 = vmul.f32 1.0, %v640
    %v642 = vtanh.pop %v627
    %v643 = vtanh.pop %v629
    %v644 = vxor.u32 %v627, 2147483648
    %v645 = vxor.u32 %v629, 2147483648
    %v646 = vmul.f32 %v644, 1.442695
    %v647 = vpow.pop %v646
    %v648 = vmul.f32 %v645, 1.442695
    %v649 = vpow.pop %v648
    %v650 = vadd.f32 %v647, 1.0
    %v651 = vadd.f32 %v649, 1.0
    %v652 = vrcp.pop %v650
    %v653 = vmul.f32 1.0, %v652
    %v654 = vrcp.pop %v651
    %v655 = vmul.f32 1.0, %v654
    %v658 = vrot.slane %v555, 7
    %v659 = vrot.slane %v556, 7
    %v662 = vmul.f32 %v639, %v658
    %v663 = vmul.f32 %v641, %v659
    %v664 = vmul.f32 %v639, %v642
    %v665 = vmul.f32 %v641, %v643
    %668 = vrot.lane.b32.xlu0 %v664, 64
    %v669 = vpop.permute.xlu0 %668
    %670 = vrot.lane.b32.xlu0 %v665, 64
    %v671 = vpop.permute.xlu0 %670
    %v674 = vadd.f32 %v662, %v669
    %v675 = vadd.f32 %v663, %v671
    %v676 = vtanh.pop %v674
    %v677 = vtanh.pop %v675
    %v678 = vmul.f32 %v653, %v676
    %v679 = vmul.f32 %v655, %v677
    %v680 = vpack.c.bf16 %v678, %v678
    %v681 = vpack.c.bf16 %v679, %v679
    %v684 = vunpack.c.l.b16 %v680
    %v685 = vunpack.c.l.b16 %v681
    %v686 = vrot.slane %v684, 2
    %v687 = vrot.slane %v685, 1
    %v688 = vsel %vm450, %v687, %v686
    %v689 = vpack.c.b16 %v688, %v688
    %690 = vrot.lane.b32.xlu0 %v689, 64
    %v691 = vpop.permute.xlu0 %690
    %v693 = vsel %vm342, %v691, 0
    %695 = vmatprep.subr.bf16.mxu0 %v327
    %696 = vmatpush1.bf16.msra.mxu0 %v326
    %697 = vmatprep.subr.bf16.mxu0 %v329
    %698 = vmatpush1.bf16.msra.mxu0 %v328
    %699 = vmatprep.subr.bf16.mxu0 %v331
    %700 = vmatpush1.bf16.msra.mxu0 %v330
    %701 = vmatprep.subr.bf16.mxu0 %v333
    %702 = vmatpush1.bf16.msra.mxu0 %v332
    %703 = vmatprep.subr.bf16.mxu0 0
    %704 = vmatpush1.bf16.msra.mxu0 0
    %705 = vmatprep.subr.bf16.mxu0 0
    %706 = vmatpush1.bf16.msra.mxu0 0
    %707 = vmatprep.subr.bf16.mxu0 0
    %708 = vmatpush1.bf16.msra.mxu0 0
    %709 = vmatprep.subr.bf16.mxu0 0
    %710 = vmatpush1.bf16.msra.mxu0 0
    %711 = vmatprep.subr.bf16.mxu0 0
    %712 = vmatpush1.bf16.msra.mxu0 0
    %713 = vmatprep.subr.bf16.mxu0 0
    %714 = vmatpush1.bf16.msra.mxu0 0
    %715 = vmatprep.subr.bf16.mxu0 0
    %716 = vmatpush1.bf16.msra.mxu0 0
    %717 = vmatprep.subr.bf16.mxu0 0
    %718 = vmatpush1.bf16.msra.mxu0 0
    %719 = vmatprep.subr.bf16.mxu0 0
    %720 = vmatpush1.bf16.msra.mxu0 0
    %721 = vmatprep.subr.bf16.mxu0 0
    %722 = vmatpush1.bf16.msra.mxu0 0
    %723 = vmatprep.subr.bf16.mxu0 0
    %724 = vmatpush1.bf16.msra.mxu0 0
    %725 = vmatprep.subr.bf16.mxu0 0
    %726 = vmatpush1.bf16.msra.mxu0 0
    %727 = vmatprep.mubr.bf16.mxu0 0
    %728 = vmatmul.mubr.bf16.gmra.mrb[0].mxu0 %v693
    %v729 = vpop.f32.mrb[0].mxu0
    %v730 = vadd.f32 0.0, %v729
    %v731 = vpop.f32.mrb[0].mxu0
    %v732 = vadd.f32 0.0, %v731
    %v733 = vpop.f32.mrb[0].mxu0
    %v734 = vpop.f32.mrb[0].mxu0
    %735 = vdwg.mxu0
    %v738 = vrot.slane %v730, 5
    %v739 = vrot.slane %v732, 5
    %v740 = vrot.slane %v730, 6
    %v741 = vrot.slane %v732, 6
    %v746 = vadd.f32 %v286, %v738
    %v747 = vadd.f32 %v288, %v739
    %v748 = vadd.f32 %v290, %v740
    %v749 = vadd.f32 %v292, %v741
    %v750 = vxor.u32 %v746, 2147483648
    %v751 = vxor.u32 %v748, 2147483648
    %v752 = vmul.f32 %v750, 1.442695
    %v753 = vpow.pop %v752
    %v754 = vmul.f32 %v751, 1.442695
    %v755 = vpow.pop %v754
    %v756 = vadd.f32 %v753, 1.0
    %v757 = vadd.f32 %v755, 1.0
    %v758 = vrcp.pop %v756
    %v759 = vmul.f32 1.0, %v758
    %v760 = vrcp.pop %v757
    %v761 = vmul.f32 1.0, %v760
    %v762 = vtanh.pop %v747
    %v763 = vtanh.pop %v749
    %v764 = vxor.u32 %v747, 2147483648
    %v765 = vxor.u32 %v749, 2147483648
    %v766 = vmul.f32 %v764, 1.442695
    %v767 = vpow.pop %v766
    %v768 = vmul.f32 %v765, 1.442695
    %v769 = vpow.pop %v768
    %v770 = vadd.f32 %v767, 1.0
    %v771 = vadd.f32 %v769, 1.0
    %v772 = vrcp.pop %v770
    %v773 = vmul.f32 1.0, %v772
    %v774 = vrcp.pop %v771
    %v775 = vmul.f32 1.0, %v774
    %v778 = vrot.slane %v674, 7
    %v779 = vrot.slane %v675, 7
    %v782 = vmul.f32 %v759, %v778
    %v783 = vmul.f32 %v761, %v779
    %v784 = vmul.f32 %v759, %v762
    %v785 = vmul.f32 %v761, %v763
    %788 = vrot.lane.b32.xlu0 %v784, 64
    %v789 = vpop.permute.xlu0 %788
    %790 = vrot.lane.b32.xlu0 %v785, 64
    %v791 = vpop.permute.xlu0 %790
    %v794 = vadd.f32 %v782, %v789
    %v795 = vadd.f32 %v783, %v791
    %v796 = vtanh.pop %v794
    %v797 = vtanh.pop %v795
    %v798 = vmul.f32 %v773, %v796
    %v799 = vmul.f32 %v775, %v797
    %v800 = vpack.c.bf16 %v798, %v798
    %v801 = vpack.c.bf16 %v799, %v799
    %v804 = vunpack.c.l.b16 %v800
    %v805 = vunpack.c.l.b16 %v801
    %v806 = vrot.slane %v804, 3
    %v807 = vrot.slane %v805, 2
    %v808 = vsel %vm450, %v807, %v806
    %v809 = vpack.c.b16 %v808, %v808
    %810 = vrot.lane.b32.xlu0 %v809, 64
    %v811 = vpop.permute.xlu0 %810
    %v813 = vsel %vm342, %v811, 0
    %815 = vmatprep.subr.bf16.mxu0 %v327
    %816 = vmatpush1.bf16.msra.mxu0 %v326
    %817 = vmatprep.subr.bf16.mxu0 %v329
    %818 = vmatpush1.bf16.msra.mxu0 %v328
    %819 = vmatprep.subr.bf16.mxu0 %v331
    %820 = vmatpush1.bf16.msra.mxu0 %v330
    %821 = vmatprep.subr.bf16.mxu0 %v333
    %822 = vmatpush1.bf16.msra.mxu0 %v332
    %823 = vmatprep.subr.bf16.mxu0 0
    %824 = vmatpush1.bf16.msra.mxu0 0
    %825 = vmatprep.subr.bf16.mxu0 0
    %826 = vmatpush1.bf16.msra.mxu0 0
    %827 = vmatprep.subr.bf16.mxu0 0
    %828 = vmatpush1.bf16.msra.mxu0 0
    %829 = vmatprep.subr.bf16.mxu0 0
    %830 = vmatpush1.bf16.msra.mxu0 0
    %831 = vmatprep.subr.bf16.mxu0 0
    %832 = vmatpush1.bf16.msra.mxu0 0
    %833 = vmatprep.subr.bf16.mxu0 0
    %834 = vmatpush1.bf16.msra.mxu0 0
    %835 = vmatprep.subr.bf16.mxu0 0
    %836 = vmatpush1.bf16.msra.mxu0 0
    %837 = vmatprep.subr.bf16.mxu0 0
    %838 = vmatpush1.bf16.msra.mxu0 0
    %839 = vmatprep.subr.bf16.mxu0 0
    %840 = vmatpush1.bf16.msra.mxu0 0
    %841 = vmatprep.subr.bf16.mxu0 0
    %842 = vmatpush1.bf16.msra.mxu0 0
    %843 = vmatprep.subr.bf16.mxu0 0
    %844 = vmatpush1.bf16.msra.mxu0 0
    %845 = vmatprep.subr.bf16.mxu0 0
    %846 = vmatpush1.bf16.msra.mxu0 0
    %847 = vmatprep.mubr.bf16.mxu0 0
    %848 = vmatmul.mubr.bf16.gmra.mrb[0].mxu0 %v813
    %v849 = vpop.f32.mrb[0].mxu0
    %v850 = vadd.f32 0.0, %v849
    %v851 = vpop.f32.mrb[0].mxu0
    %v852 = vadd.f32 0.0, %v851
    %v853 = vpop.f32.mrb[0].mxu0
    %v854 = vpop.f32.mrb[0].mxu0
    %855 = vdwg.mxu0
    %v858 = vrot.slane %v850, 4
    %v859 = vrot.slane %v852, 4
    %v860 = vrot.slane %v850, 5
    %v861 = vrot.slane %v852, 5
    %v866 = vadd.f32 %v286, %v858
    %v867 = vadd.f32 %v288, %v859
    %v868 = vadd.f32 %v290, %v860
    %v869 = vadd.f32 %v292, %v861
    %v870 = vxor.u32 %v866, 2147483648
    %v871 = vxor.u32 %v868, 2147483648
    %v872 = vmul.f32 %v870, 1.442695
    %v873 = vpow.pop %v872
    %v874 = vmul.f32 %v871, 1.442695
    %v875 = vpow.pop %v874
    %v876 = vadd.f32 %v873, 1.0
    %v877 = vadd.f32 %v875, 1.0
    %v878 = vrcp.pop %v876
    %v879 = vmul.f32 1.0, %v878
    %v880 = vrcp.pop %v877
    %v881 = vmul.f32 1.0, %v880
    %v882 = vtanh.pop %v867
    %v883 = vtanh.pop %v869
    %v884 = vxor.u32 %v867, 2147483648
    %v885 = vxor.u32 %v869, 2147483648
    %v886 = vmul.f32 %v884, 1.442695
    %v887 = vpow.pop %v886
    %v888 = vmul.f32 %v885, 1.442695
    %v889 = vpow.pop %v888
    %v890 = vadd.f32 %v887, 1.0
    %v891 = vadd.f32 %v889, 1.0
    %v892 = vrcp.pop %v890
    %v893 = vmul.f32 1.0, %v892
    %v894 = vrcp.pop %v891
    %v895 = vmul.f32 1.0, %v894
    %v898 = vrot.slane %v794, 7
    %v899 = vrot.slane %v795, 7
    %v902 = vmul.f32 %v879, %v898
    %v903 = vmul.f32 %v881, %v899
    %v904 = vmul.f32 %v879, %v882
    %v905 = vmul.f32 %v881, %v883
    %908 = vrot.lane.b32.xlu0 %v904, 64
    %v909 = vpop.permute.xlu0 %908
    %910 = vrot.lane.b32.xlu0 %v905, 64
    %v911 = vpop.permute.xlu0 %910
    %v914 = vadd.f32 %v902, %v909
    %v915 = vadd.f32 %v903, %v911
    %v916 = vtanh.pop %v914
    %v917 = vtanh.pop %v915
    %v918 = vmul.f32 %v893, %v916
    %v919 = vmul.f32 %v895, %v917
    %v920 = vpack.c.bf16 %v918, %v918
    %v921 = vpack.c.bf16 %v919, %v919
    %v924 = vunpack.c.l.b16 %v920
    %v925 = vunpack.c.l.b16 %v921
    %v926 = vrot.slane %v924, 4
    %v927 = vrot.slane %v925, 3
    %v928 = vsel %vm450, %v927, %v926
    %v929 = vpack.c.b16 %v928, %v928
    %930 = vrot.lane.b32.xlu0 %v929, 64
    %v931 = vpop.permute.xlu0 %930
    %v933 = vsel %vm342, %v931, 0
    %935 = vmatprep.subr.bf16.mxu0 %v327
    %936 = vmatpush1.bf16.msra.mxu0 %v326
    %937 = vmatprep.subr.bf16.mxu0 %v329
    %938 = vmatpush1.bf16.msra.mxu0 %v328
    %939 = vmatprep.subr.bf16.mxu0 %v331
    %940 = vmatpush1.bf16.msra.mxu0 %v330
    %941 = vmatprep.subr.bf16.mxu0 %v333
    %942 = vmatpush1.bf16.msra.mxu0 %v332
    %943 = vmatprep.subr.bf16.mxu0 0
    %944 = vmatpush1.bf16.msra.mxu0 0
    %945 = vmatprep.subr.bf16.mxu0 0
    %946 = vmatpush1.bf16.msra.mxu0 0
    %947 = vmatprep.subr.bf16.mxu0 0
    %948 = vmatpush1.bf16.msra.mxu0 0
    %949 = vmatprep.subr.bf16.mxu0 0
    %950 = vmatpush1.bf16.msra.mxu0 0
    %951 = vmatprep.subr.bf16.mxu0 0
    %952 = vmatpush1.bf16.msra.mxu0 0
    %953 = vmatprep.subr.bf16.mxu0 0
    %954 = vmatpush1.bf16.msra.mxu0 0
    %955 = vmatprep.subr.bf16.mxu0 0
    %956 = vmatpush1.bf16.msra.mxu0 0
    %957 = vmatprep.subr.bf16.mxu0 0
    %958 = vmatpush1.bf16.msra.mxu0 0
    %959 = vmatprep.subr.bf16.mxu0 0
    %960 = vmatpush1.bf16.msra.mxu0 0
    %961 = vmatprep.subr.bf16.mxu0 0
    %962 = vmatpush1.bf16.msra.mxu0 0
    %963 = vmatprep.subr.bf16.mxu0 0
    %964 = vmatpush1.bf16.msra.mxu0 0
    %965 = vmatprep.subr.bf16.mxu0 0
    %966 = vmatpush1.bf16.msra.mxu0 0
    %967 = vmatprep.mubr.bf16.mxu0 0
    %968 = vmatmul.mubr.bf16.gmra.mrb[0].mxu0 %v933
    %v969 = vpop.f32.mrb[0].mxu0
    %v970 = vadd.f32 0.0, %v969
    %v971 = vpop.f32.mrb[0].mxu0
    %v972 = vadd.f32 0.0, %v971
    %v973 = vpop.f32.mrb[0].mxu0
    %v974 = vpop.f32.mrb[0].mxu0
    %975 = vdwg.mxu0
    %v978 = vrot.slane %v970, 3
    %v979 = vrot.slane %v972, 3
    %v980 = vrot.slane %v970, 4
    %v981 = vrot.slane %v972, 4
    %v986 = vadd.f32 %v286, %v978
    %v987 = vadd.f32 %v288, %v979
    %v988 = vadd.f32 %v290, %v980
    %v989 = vadd.f32 %v292, %v981
    %v990 = vxor.u32 %v986, 2147483648
    %v991 = vxor.u32 %v988, 2147483648
    %v992 = vmul.f32 %v990, 1.442695
    %v993 = vpow.pop %v992
    %v994 = vmul.f32 %v991, 1.442695
    %v995 = vpow.pop %v994
    %v996 = vadd.f32 %v993, 1.0
    %v997 = vadd.f32 %v995, 1.0
    %v998 = vrcp.pop %v996
    %v999 = vmul.f32 1.0, %v998
    %v1000 = vrcp.pop %v997
    %v1001 = vmul.f32 1.0, %v1000
    %v1002 = vtanh.pop %v987
    %v1003 = vtanh.pop %v989
    %v1004 = vxor.u32 %v987, 2147483648
    %v1005 = vxor.u32 %v989, 2147483648
    %v1006 = vmul.f32 %v1004, 1.442695
    %v1007 = vpow.pop %v1006
    %v1008 = vmul.f32 %v1005, 1.442695
    %v1009 = vpow.pop %v1008
    %v1010 = vadd.f32 %v1007, 1.0
    %v1011 = vadd.f32 %v1009, 1.0
    %v1012 = vrcp.pop %v1010
    %v1013 = vmul.f32 1.0, %v1012
    %v1014 = vrcp.pop %v1011
    %v1015 = vmul.f32 1.0, %v1014
    %v1018 = vrot.slane %v914, 7
    %v1019 = vrot.slane %v915, 7
    %v1022 = vmul.f32 %v999, %v1018
    %v1023 = vmul.f32 %v1001, %v1019
    %v1024 = vmul.f32 %v999, %v1002
    %v1025 = vmul.f32 %v1001, %v1003
    %1028 = vrot.lane.b32.xlu0 %v1024, 64
    %v1029 = vpop.permute.xlu0 %1028
    %1030 = vrot.lane.b32.xlu0 %v1025, 64
    %v1031 = vpop.permute.xlu0 %1030
    %v1034 = vadd.f32 %v1022, %v1029
    %v1035 = vadd.f32 %v1023, %v1031
    %v1036 = vtanh.pop %v1034
    %v1037 = vtanh.pop %v1035
    %v1038 = vmul.f32 %v1013, %v1036
    %v1039 = vmul.f32 %v1015, %v1037
    %v1040 = vpack.c.bf16 %v1038, %v1038
    %v1041 = vpack.c.bf16 %v1039, %v1039
    %v1044 = vunpack.c.l.b16 %v1040
    %v1045 = vunpack.c.l.b16 %v1041
    %v1046 = vrot.slane %v1044, 5
    %v1047 = vrot.slane %v1045, 4
    %v1048 = vsel %vm450, %v1047, %v1046
    %v1049 = vpack.c.b16 %v1048, %v1048
    %1050 = vrot.lane.b32.xlu0 %v1049, 64
    %v1051 = vpop.permute.xlu0 %1050
    %v1053 = vsel %vm342, %v1051, 0
    %1055 = vmatprep.subr.bf16.mxu0 %v327
    %1056 = vmatpush1.bf16.msra.mxu0 %v326
    %1057 = vmatprep.subr.bf16.mxu0 %v329
    %1058 = vmatpush1.bf16.msra.mxu0 %v328
    %1059 = vmatprep.subr.bf16.mxu0 %v331
    %1060 = vmatpush1.bf16.msra.mxu0 %v330
    %1061 = vmatprep.subr.bf16.mxu0 %v333
    %1062 = vmatpush1.bf16.msra.mxu0 %v332
    %1063 = vmatprep.subr.bf16.mxu0 0
    %1064 = vmatpush1.bf16.msra.mxu0 0
    %1065 = vmatprep.subr.bf16.mxu0 0
    %1066 = vmatpush1.bf16.msra.mxu0 0
    %1067 = vmatprep.subr.bf16.mxu0 0
    %1068 = vmatpush1.bf16.msra.mxu0 0
    %1069 = vmatprep.subr.bf16.mxu0 0
    %1070 = vmatpush1.bf16.msra.mxu0 0
    %1071 = vmatprep.subr.bf16.mxu0 0
    %1072 = vmatpush1.bf16.msra.mxu0 0
    %1073 = vmatprep.subr.bf16.mxu0 0
    %1074 = vmatpush1.bf16.msra.mxu0 0
    %1075 = vmatprep.subr.bf16.mxu0 0
    %1076 = vmatpush1.bf16.msra.mxu0 0
    %1077 = vmatprep.subr.bf16.mxu0 0
    %1078 = vmatpush1.bf16.msra.mxu0 0
    %1079 = vmatprep.subr.bf16.mxu0 0
    %1080 = vmatpush1.bf16.msra.mxu0 0
    %1081 = vmatprep.subr.bf16.mxu0 0
    %1082 = vmatpush1.bf16.msra.mxu0 0
    %1083 = vmatprep.subr.bf16.mxu0 0
    %1084 = vmatpush1.bf16.msra.mxu0 0
    %1085 = vmatprep.subr.bf16.mxu0 0
    %1086 = vmatpush1.bf16.msra.mxu0 0
    %1087 = vmatprep.mubr.bf16.mxu0 0
    %1088 = vmatmul.mubr.bf16.gmra.mrb[0].mxu0 %v1053
    %v1089 = vpop.f32.mrb[0].mxu0
    %v1090 = vadd.f32 0.0, %v1089
    %v1091 = vpop.f32.mrb[0].mxu0
    %v1092 = vadd.f32 0.0, %v1091
    %v1093 = vpop.f32.mrb[0].mxu0
    %v1094 = vpop.f32.mrb[0].mxu0
    %1095 = vdwg.mxu0
    %v1098 = vrot.slane %v1090, 2
    %v1099 = vrot.slane %v1092, 2
    %v1100 = vrot.slane %v1090, 3
    %v1101 = vrot.slane %v1092, 3
    %v1106 = vadd.f32 %v286, %v1098
    %v1107 = vadd.f32 %v288, %v1099
    %v1108 = vadd.f32 %v290, %v1100
    %v1109 = vadd.f32 %v292, %v1101
    %v1110 = vxor.u32 %v1106, 2147483648
    %v1111 = vxor.u32 %v1108, 2147483648
    %v1112 = vmul.f32 %v1110, 1.442695
    %v1113 = vpow.pop %v1112
    %v1114 = vmul.f32 %v1111, 1.442695
    %v1115 = vpow.pop %v1114
    %v1116 = vadd.f32 %v1113, 1.0
    %v1117 = vadd.f32 %v1115, 1.0
    %v1118 = vrcp.pop %v1116
    %v1119 = vmul.f32 1.0, %v1118
    %v1120 = vrcp.pop %v1117
    %v1121 = vmul.f32 1.0, %v1120
    %v1122 = vtanh.pop %v1107
    %v1123 = vtanh.pop %v1109
    %v1124 = vxor.u32 %v1107, 2147483648
    %v1125 = vxor.u32 %v1109, 2147483648
    %v1126 = vmul.f32 %v1124, 1.442695
    %v1127 = vpow.pop %v1126
    %v1128 = vmul.f32 %v1125, 1.442695
    %v1129 = vpow.pop %v1128
    %v1130 = vadd.f32 %v1127, 1.0
    %v1131 = vadd.f32 %v1129, 1.0
    %v1132 = vrcp.pop %v1130
    %v1133 = vmul.f32 1.0, %v1132
    %v1134 = vrcp.pop %v1131
    %v1135 = vmul.f32 1.0, %v1134
    %v1138 = vrot.slane %v1034, 7
    %v1139 = vrot.slane %v1035, 7
    %v1142 = vmul.f32 %v1119, %v1138
    %v1143 = vmul.f32 %v1121, %v1139
    %v1144 = vmul.f32 %v1119, %v1122
    %v1145 = vmul.f32 %v1121, %v1123
    %1148 = vrot.lane.b32.xlu0 %v1144, 64
    %v1149 = vpop.permute.xlu0 %1148
    %1150 = vrot.lane.b32.xlu0 %v1145, 64
    %v1151 = vpop.permute.xlu0 %1150
    %v1154 = vadd.f32 %v1142, %v1149
    %v1155 = vadd.f32 %v1143, %v1151
    %v1156 = vtanh.pop %v1154
    %v1157 = vtanh.pop %v1155
    %v1158 = vmul.f32 %v1133, %v1156
    %v1159 = vmul.f32 %v1135, %v1157
    %v1160 = vpack.c.bf16 %v1158, %v1158
    %v1161 = vpack.c.bf16 %v1159, %v1159
    %v1164 = vunpack.c.l.b16 %v1160
    %v1165 = vunpack.c.l.b16 %v1161
    %v1166 = vrot.slane %v1164, 6
    %v1167 = vrot.slane %v1165, 5
    %v1168 = vsel %vm450, %v1167, %v1166
    %v1169 = vpack.c.b16 %v1168, %v1168
    %1170 = vrot.lane.b32.xlu0 %v1169, 64
    %v1171 = vpop.permute.xlu0 %1170
    %v1173 = vsel %vm342, %v1171, 0
    %1175 = vmatprep.subr.bf16.mxu0 %v327
    %1176 = vmatpush1.bf16.msra.mxu0 %v326
    %1177 = vmatprep.subr.bf16.mxu0 %v329
    %1178 = vmatpush1.bf16.msra.mxu0 %v328
    %1179 = vmatprep.subr.bf16.mxu0 %v331
    %1180 = vmatpush1.bf16.msra.mxu0 %v330
    %1181 = vmatprep.subr.bf16.mxu0 %v333
    %1182 = vmatpush1.bf16.msra.mxu0 %v332
    %1183 = vmatprep.subr.bf16.mxu0 0
    %1184 = vmatpush1.bf16.msra.mxu0 0
    %1185 = vmatprep.subr.bf16.mxu0 0
    %1186 = vmatpush1.bf16.msra.mxu0 0
    %1187 = vmatprep.subr.bf16.mxu0 0
    %1188 = vmatpush1.bf16.msra.mxu0 0
    %1189 = vmatprep.subr.bf16.mxu0 0
    %1190 = vmatpush1.bf16.msra.mxu0 0
    %1191 = vmatprep.subr.bf16.mxu0 0
    %1192 = vmatpush1.bf16.msra.mxu0 0
    %1193 = vmatprep.subr.bf16.mxu0 0
    %1194 = vmatpush1.bf16.msra.mxu0 0
    %1195 = vmatprep.subr.bf16.mxu0 0
    %1196 = vmatpush1.bf16.msra.mxu0 0
    %1197 = vmatprep.subr.bf16.mxu0 0
    %1198 = vmatpush1.bf16.msra.mxu0 0
    %1199 = vmatprep.subr.bf16.mxu0 0
    %1200 = vmatpush1.bf16.msra.mxu0 0
    %1201 = vmatprep.subr.bf16.mxu0 0
    %1202 = vmatpush1.bf16.msra.mxu0 0
    %1203 = vmatprep.subr.bf16.mxu0 0
    %1204 = vmatpush1.bf16.msra.mxu0 0
    %1205 = vmatprep.subr.bf16.mxu0 0
    %1206 = vmatpush1.bf16.msra.mxu0 0
    %1207 = vmatprep.mubr.bf16.mxu0 0
    %1208 = vmatmul.mubr.bf16.gmra.mrb[0].mxu0 %v1173
    %v1209 = vpop.f32.mrb[0].mxu0
    %v1210 = vadd.f32 0.0, %v1209
    %v1211 = vpop.f32.mrb[0].mxu0
    %v1212 = vadd.f32 0.0, %v1211
    %v1213 = vpop.f32.mrb[0].mxu0
    %v1214 = vpop.f32.mrb[0].mxu0
    %1215 = vdwg.mxu0
    %v1218 = vrot.slane %v1210, 1
    %v1219 = vrot.slane %v1212, 1
    %v1220 = vrot.slane %v1210, 2
    %v1221 = vrot.slane %v1212, 2
    %v1226 = vadd.f32 %v286, %v1218
    %v1227 = vadd.f32 %v288, %v1219
    %v1228 = vadd.f32 %v290, %v1220
    %v1229 = vadd.f32 %v292, %v1221
    %v1230 = vxor.u32 %v1226, 2147483648
    %v1231 = vxor.u32 %v1228, 2147483648
    %v1232 = vmul.f32 %v1230, 1.442695
    %v1233 = vpow.pop %v1232
    %v1234 = vmul.f32 %v1231, 1.442695
    %v1235 = vpow.pop %v1234
    %v1236 = vadd.f32 %v1233, 1.0
    %v1237 = vadd.f32 %v1235, 1.0
    %v1238 = vrcp.pop %v1236
    %v1239 = vmul.f32 1.0, %v1238
    %v1240 = vrcp.pop %v1237
    %v1241 = vmul.f32 1.0, %v1240
    %v1242 = vtanh.pop %v1227
    %v1243 = vtanh.pop %v1229
    %v1244 = vxor.u32 %v1227, 2147483648
    %v1245 = vxor.u32 %v1229, 2147483648
    %v1246 = vmul.f32 %v1244, 1.442695
    %v1247 = vpow.pop %v1246
    %v1248 = vmul.f32 %v1245, 1.442695
    %v1249 = vpow.pop %v1248
    %v1250 = vadd.f32 %v1247, 1.0
    %v1251 = vadd.f32 %v1249, 1.0
    %v1252 = vrcp.pop %v1250
    %v1253 = vmul.f32 1.0, %v1252
    %v1254 = vrcp.pop %v1251
    %v1255 = vmul.f32 1.0, %v1254
    %v1258 = vrot.slane %v1154, 7
    %v1259 = vrot.slane %v1155, 7
    %v1262 = vmul.f32 %v1239, %v1258
    %v1263 = vmul.f32 %v1241, %v1259
    %v1264 = vmul.f32 %v1239, %v1242
    %v1265 = vmul.f32 %v1241, %v1243
    %1268 = vrot.lane.b32.xlu0 %v1264, 64
    %v1269 = vpop.permute.xlu0 %1268
    %1270 = vrot.lane.b32.xlu0 %v1265, 64
    %v1271 = vpop.permute.xlu0 %1270
    %v1274 = vadd.f32 %v1262, %v1269
    %v1275 = vadd.f32 %v1263, %v1271
    %v1276 = vtanh.pop %v1274
    %v1277 = vtanh.pop %v1275
    %v1278 = vmul.f32 %v1253, %v1276
    %v1279 = vmul.f32 %v1255, %v1277
    %v1282 = vrot.slane %v1279, 7
    %1283 = vrot.lane.b32.xlu0 %v1278, 64
    %v1284 = vpop.permute.xlu0 %1283
    %1285 = vrot.lane.b32.xlu0 %v1282, 64
    %v1286 = vpop.permute.xlu0 %1285
    %vm1289 = vcmask 523271
    %1290 = vst.msk [vmem:[#allocation10 - $0x7] sm:$0x80] %vm1289, %v1284
    %vm1291 = vcmask 516096
    %1292 = vst.msk [vmem:[#allocation10 + $0x1] sm:$0x1] %vm1291, %v1286
    // Predicated region
    $region38: #{tpu_custom_call.1} parent=1 // pred_check
      _
    $region39: #{tpu_custom_call.1} parent=1 // pred_check_branch
      %1294 = sbr.rel (0) target = $region41
    $region40: #{tpu_custom_call.1} parent=1 // pred_region
      %s1296 = ssub.s32 32, 32
      %1297 = vsyncadd [#allocation4], %s1296
      %s1299 = sshll.u32 [#allocation10], 4
      %s1300 = int_to_ptr.vmem [resolvable:$true] %s1299
      %1302 = dma.vmem_to_hbm [thread:$0]  %s1300, 32, %s5, [#allocation4]
    $region41: #{tpu_custom_call.1} parent=1 // pred_fallthru
      _
    // Predicated region
    $region42: #{tpu_custom_call.1} parent=1 // pred_check
      _
    $region43: #{tpu_custom_call.1} parent=1 // pred_check_branch
      %1304 = sbr.rel (0) target = $region45
    $region44: #{tpu_custom_call.1} parent=1 // pred_region
      %s1306 = ssub.s32 256, 256
      %1307 = vsyncadd [#allocation12], %s1306
      %s1308 = sshll.u32 [#allocation11], 4
      %s1309 = int_to_ptr.vmem [resolvable:$true] %s1308
      %1314 = dma.vmem_to_hbm [thread:$0]  %s1309, 256, %s6, [#allocation12], 128, 128, 8
    $region45: #{tpu_custom_call.1} parent=1 // pred_fallthru
      _
    // Predicated region
    $region46: #{tpu_custom_call.1} parent=1 // pred_check
      _
    $region47: #{tpu_custom_call.1} parent=1 // pred_check_branch
      %1316 = sbr.rel (0) target = $region49
    $region48: #{tpu_custom_call.1} parent=1 // pred_region
      %1317 = dma.done [#allocation4], 32
    $region49: #{tpu_custom_call.1} parent=1 // pred_fallthru
      _
    // Predicated region
    $region50: #{tpu_custom_call.1} parent=1 // pred_check
      _
    $region51: #{tpu_custom_call.1} parent=1 // pred_check_branch
      %1319 = sbr.rel (0) target = $region53
    $region52: #{tpu_custom_call.1} parent=1 // pred_region
      %1320 = dma.done [#allocation12], 256
    $region53: #{tpu_custom_call.1} parent=1 // pred_fallthru
      _
    %1321 = vsyncpa [#allocation3], 1
    %1322 = vsyncpa [#allocation6], 1
    %1323 = vsyncpa [#allocation9], 1
    %1324 = vsyncpa [#allocation4], 1
    %1325 = vsyncpa [#allocation12], 1

</llo_original>
